<compile_context>
chip_gen: v7x
topology: tpu7x:2x2x1
jax: 0.10.0
libtpu: 0.0.40
codegen_flags: <defaults>
</compile_context>

<pallas_src>
import functools

import numpy as np
import jax
import jax.numpy as jnp
from jax import lax
from jax.experimental import pallas as pl
from jax.experimental.pallas import tpu as pltpu


def _make_conv_masks(H, W):
    """Combined (row x col) zero-padding validity masks for the 9 taps of a
    3x3 conv with padding=1, in the flattened (H*W,) layout. Shape (9, H*W)."""
    HW = H * W
    pos = np.arange(HW)
    row = pos // W
    col = pos % W
    masks = np.zeros((9, HW), np.float32)
    for ki in range(3):
        for kj in range(3):
            si, sj = 1 - ki, 1 - kj
            valid_r = (row >= max(0, si)) & (row < min(H, H + si))
            valid_c = (col >= max(0, sj)) & (col < min(W, W + sj))
            masks[ki * 3 + kj] = (valid_r & valid_c).astype(np.float32)
    return masks


def cbam_kernel(x_ref, w1t_ref, b1_ref, w2t_ref, b2_ref, wsp_ref, bsp_ref,
                masks_ref, o_ref, *, W, mlp_bf16):
    Nb, C, HW = x_ref.shape

    x = x_ref[...]
    # Elementwise compute dtype: bf16 stays bf16 (halves VPU work + VMEM on
    # v6e/v7x); everything else is promoted to f32.
    ew_dtype = jnp.bfloat16 if x.dtype == jnp.bfloat16 else jnp.float32
    if x.dtype != ew_dtype:
        x = x.astype(ew_dtype)

    # ---- channel attention: global avg / max pool over HW (lane reduces,
    # f32 accumulation) ----
    avg = jnp.sum(x, axis=2, dtype=jnp.float32) * (1.0 / float(HW))  # (Nb, C)
    mx = jnp.max(x, axis=2).astype(jnp.float32)                      # (Nb, C)

    # Fused MLP: both pooled vectors of all images in one pair of matmuls.
    pooled = jnp.concatenate([avg, mx], axis=0)                      # (2Nb, C)
    if mlp_bf16:
        pooled_in = pooled.astype(jnp.bfloat16)
        w1t = w1t_ref[...].astype(jnp.bfloat16)
        w2t = w2t_ref[...].astype(jnp.bfloat16)
    else:
        pooled_in, w1t, w2t = pooled, w1t_ref[...], w2t_ref[...]

    h = jnp.maximum(
        jnp.dot(pooled_in, w1t, preferred_element_type=jnp.float32)
        + b1_ref[...], 0.0)                                          # (2Nb, Cr)
    if mlp_bf16:
        h = h.astype(jnp.bfloat16)
    proj = (jnp.dot(h, w2t, preferred_element_type=jnp.float32)
            + b2_ref[...])                                           # (2Nb, C)
    chn = jax.nn.sigmoid(proj[:Nb] + proj[Nb:])                      # (Nb, C) f32

    x1 = x * chn.astype(ew_dtype)[:, :, None]                        # (Nb, C, HW)

    # ---- spatial attention: mean / max over channels (sublane reduces,
    # f32 accumulation) ----
    mean_sp = jnp.sum(x1, axis=1, dtype=jnp.float32) * (1.0 / float(C))  # (Nb, HW)
    max_sp = jnp.max(x1, axis=1).astype(jnp.float32)                     # (Nb, HW)

    # Stack both planes so each 3x3 tap needs only ONE lane roll (XLU).
    planes = jnp.concatenate([mean_sp, max_sp], axis=0)              # (2Nb, HW)
    rowidx = lax.broadcasted_iota(jnp.int32, (2 * Nb, 1), 0)
    is_mean = rowidx < Nb                                            # (2Nb, 1)

    acc2 = jnp.zeros((2 * Nb, HW), jnp.float32)
    for ki in range(3):
        for kj in range(3):
            t = ki * 3 + kj
            si, sj = 1 - ki, 1 - kj
            shift = (si * W + sj) % HW
            r = planes if shift == 0 else pltpu.roll(planes, shift=shift, axis=1)
            # per-plane tap weight selected along the stacked (sublane) axis
            wcol = jnp.where(is_mean, wsp_ref[t], wsp_ref[9 + t])    # (2Nb, 1)
            m = masks_ref[pl.ds(t, 1), :]                            # (1, HW)
            acc2 = acc2 + m * (wcol * r)

    acc = acc2[:Nb] + acc2[Nb:]                                      # (Nb, HW)
    sp = jax.nn.sigmoid(acc + bsp_ref[0])                            # (Nb, HW) f32

    o_ref[...] = (x1 * sp.astype(ew_dtype)[:, None, :]).astype(o_ref.dtype)


def cbam_pallas(x, w1, b1, w2, b2, w_sp_flat, b_sp, *, block_n=None,
                out_dtype=None, vmem_limit_bytes=None):
    """CBAM forward. x: (N, C, H, W), consumed in its own dtype (no wrapper
    cast; hand in bf16 upstream for bf16 I/O). Weights in PyTorch layout:
    w1 (Cr, C), b1 (Cr, 1), w2 (C, Cr), b2 (C, 1), w_sp_flat (18,), b_sp (1,).
    """
    N, C, H, W = x.shape
    HW = H * W
    Cr = w1.shape[0]
    in_dtype = x.dtype
    if out_dtype is None:
        out_dtype = in_dtype

    # Single vs dual TensorCore (v7x) heuristic.
    try:
        kind = jax.devices()[0].device_kind.lower()
    except Exception:  # pragma: no cover
        kind = ""
    multi_tc = "v7" in kind

    in_b = jnp.dtype(in_dtype).itemsize
    out_b = jnp.dtype(out_dtype).itemsize
    ew_b = 2 if in_dtype == jnp.bfloat16 else 4
    per_img_in = C * HW * in_b
    per_img_out = C * HW * out_b
    per_img_tmp = C * HW * ew_b                     # x / x1 sized temporaries

    sub = 16 if in_dtype == jnp.bfloat16 else 8     # sublane packing multiple

    if block_n is None:
        # ~3 MiB of input per grid step (HBM roofline sweet spot), capped so
        # the per-step VMEM footprint (2x in + 2x out double-buffered plus ~3
        # full-block temporaries) stays <= ~48 MiB (v7x has 64 MiB/TC).
        target = max(1, (3 * 1024 * 1024) // per_img_in)
        vmem_cap = max(1, (48 * 1024 * 1024) //
                       (2 * per_img_in + 2 * per_img_out + 3 * per_img_tmp))
        block_n = min(target, vmem_cap)
        if multi_tc:
            # keep >=2 grid steps so both v7x TensorCores get work
            block_n = min(block_n, max(1, -(-N // 2)))
        block_n = min(block_n, N)
        block_n = -(-block_n // sub) * sub          # round up to sublane multiple
    else:
        block_n = int(max(1, min(block_n, N)))

    if vmem_limit_bytes is None:
        vmem_limit_bytes = (48 if multi_tc else 64) * 1024 * 1024

    n_blocks = -(-N // block_n)
    Np = n_blocks * block_n

    xr = x.reshape(N, C, HW)
    if Np != N:
        xr = jnp.pad(xr, ((0, Np - N), (0, 0), (0, 0)))
    # NOTE: padded batch rows are garbage attention; they are sliced off below.

    f32 = jnp.float32
    # Pre-transpose the 1x1-conv weights so the kernel does pooled @ W^T directly.
    w1_t = jnp.asarray(w1, f32).T                   # (C, Cr)
    w2_t = jnp.asarray(w2, f32).T                   # (Cr, C)
    b1_r = jnp.asarray(b1, f32).reshape(1, Cr)
    b2_r = jnp.asarray(b2, f32).reshape(1, C)
    wsp = jnp.asarray(w_sp_flat, f32).reshape(18)
    bsp = jnp.asarray(b_sp, f32).reshape(1)
    masks = jnp.asarray(_make_conv_masks(H, W))     # (9, HW) f32 constant

    kernel = functools.partial(cbam_kernel, W=W,
                               mlp_bf16=(in_dtype == jnp.bfloat16))

    out = pl.pallas_call(
        kernel,
        out_shape=jax.ShapeDtypeStruct((Np, C, HW), out_dtype),
        grid=(n_blocks,),
        in_specs=[
            pl.BlockSpec((block_n, C, HW), lambda n: (n, 0, 0)),
            pl.BlockSpec((C, Cr), lambda n: (0, 0)),
            pl.BlockSpec((1, Cr), lambda n: (0, 0)),
            pl.BlockSpec((Cr, C), lambda n: (0, 0)),
            pl.BlockSpec((1, C), lambda n: (0, 0)),
            pl.BlockSpec(memory_space=pltpu.MemorySpace.SMEM),
            pl.BlockSpec(memory_space=pltpu.MemorySpace.SMEM),
            pl.BlockSpec((9, HW), lambda n: (0, 0)),
        ],
        out_specs=pl.BlockSpec((block_n, C, HW), lambda n: (n, 0, 0)),
        compiler_params=pltpu.CompilerParams(
            dimension_semantics=("parallel",),
            vmem_limit_bytes=int(vmem_limit_bytes)),
    )(xr, w1_t, b1_r, w2_t, b2_r, wsp, bsp, masks)

    return out[:N].reshape(N, C, H, W)


def cbam_ref(x, w1, b1, w2, b2, w_sp_flat, b_sp):
    """Pure-JAX reference matching the PyTorch forward."""
    avg = jnp.mean(x, axis=(2, 3))  # (N, C)
    mx = jnp.max(x, axis=(2, 3))    # (N, C)

    def mlp(v):
        h = jax.nn.relu(v @ w1.T + b1[:, 0])
        return h @ w2.T + b2[:, 0]

    chn = jax.nn.sigmoid(mlp(avg) + mlp(mx))[:, :, None, None]
    x1 = x * chn
    mean_sp = jnp.mean(x1, axis=1, keepdims=True)
    max_sp = jnp.max(x1, axis=1, keepdims=True)
    cat = jnp.concatenate([mean_sp, max_sp], axis=1)  # (N, 2, H, W)
    conv = lax.conv_general_dilated(
        cat, w_sp_flat.reshape(1, 2, 3, 3), window_strides=(1, 1), padding="SAME",
        dimension_numbers=("NCHW", "OIHW", "NCHW")) + b_sp[0]
    return x1 * jax.nn.sigmoid(conv)


if __name__ == "__main__":
    N, C, H, W = 2, 32, 16, 16
    reduction = 16
    Cr = C // reduction

    key = jax.random.PRNGKey(0)
    kx, k1, k2, k3, k4, k5, k6 = jax.random.split(key, 7)

    x = jax.random.normal(kx, (N, C, H, W), dtype=jnp.float32)
    # fc1: Conv2d(C, C//r, 1) -> weight (Cr, C), bias (Cr,)
    w1 = jax.random.normal(k1, (Cr, C), dtype=jnp.float32) * 0.1
    b1 = jax.random.normal(k2, (Cr, 1), dtype=jnp.float32) * 0.1
    # fc2: Conv2d(C//r, C, 1) -> weight (C, Cr), bias (C,)
    w2 = jax.random.normal(k3, (C, Cr), dtype=jnp.float32) * 0.1
    b2 = jax.random.normal(k4, (C, 1), dtype=jnp.float32) * 0.1
    # conv_after_concat: Conv2d(2, 1, 3, padding=1) -> weight (1,2,3,3), bias (1,)
    w_sp_flat = jax.random.normal(k5, (18,), dtype=jnp.float32) * 0.1
    b_sp = jax.random.normal(k6, (1,), dtype=jnp.float32) * 0.1

    ref = cbam_ref(x, w1, b1, w2, b2, w_sp_flat, b_sp)

    # f32, auto block size (rounded to a sublane multiple, batch padded).
    out = jax.block_until_ready(cbam_pallas(x, w1, b1, w2, b2, w_sp_flat, b_sp))
    np.testing.assert_allclose(np.asarray(out), np.asarray(ref),
                               rtol=1e-4, atol=1e-5)

    # f32, explicit block_n=1 -> exercises the multi-step grid / pipelining.
    out_b = jax.block_until_ready(
        cbam_pallas(x, w1, b1, w2, b2, w_sp_flat, b_sp, block_n=1))
    np.testing.assert_allclose(np.asarray(out_b), np.asarray(ref),
                               rtol=1e-4, atol=1e-5)

    # bf16 handed in upstream (no wrapper cast); elementwise passes + MLP
    # operands run in bf16 inside the kernel, accumulations stay f32.
    x_bf = x.astype(jnp.bfloat16)
    out_bf = jax.block_until_ready(
        cbam_pallas(x_bf, w1, b1, w2, b2, w_sp_flat, b_sp))
    np.testing.assert_allclose(np.asarray(out_bf.astype(jnp.float32)),
                               np.asarray(ref), rtol=5e-2, atol=5e-2)

    print("KERNEL_OK")
</pallas_src>

<mosaic_0001>
module attributes {stable_mosaic.version = 11 : i64} {
  func.func @cbam_kernel(%arg0: i32, %arg1: memref<8x32x256xf32, #tpu.memory_space<vmem>>, %arg2: memref<32x2xf32, #tpu.memory_space<vmem>>, %arg3: memref<1x2xf32, #tpu.memory_space<vmem>>, %arg4: memref<2x32xf32, #tpu.memory_space<vmem>>, %arg5: memref<1x32xf32, #tpu.memory_space<vmem>>, %arg6: memref<18xf32, #tpu.memory_space<smem>>, %arg7: memref<1xf32, #tpu.memory_space<smem>>, %arg8: memref<9x256xf32, #tpu.memory_space<vmem>>, %arg9: memref<8x32x256xf32, #tpu.memory_space<vmem>>) attributes {dimension_semantics = [#tpu.dimension_semantics<parallel>], iteration_bounds = array<i64: 1>, scalar_prefetch = 0 : i64, scratch_operands = 0 : i64, tpu.core_type = #tpu.core_type<tc>, window_params = [{transform_indices = @transform_0, window_bounds = array<i64: 8, 32, 256>}, {pipeline_mode = #tpu.pipeline_mode<synchronous>, transform_indices = @transform_1, window_bounds = array<i64: 32, 2>}, {pipeline_mode = #tpu.pipeline_mode<synchronous>, transform_indices = @transform_2, window_bounds = array<i64: 1, 2>}, {pipeline_mode = #tpu.pipeline_mode<synchronous>, transform_indices = @transform_3, window_bounds = array<i64: 2, 32>}, {pipeline_mode = #tpu.pipeline_mode<synchronous>, transform_indices = @transform_4, window_bounds = array<i64: 1, 32>}, {transform_indices = @transform_5, window_bounds = array<i64: 18>}, {transform_indices = @transform_6, window_bounds = array<i64: 1>}, {pipeline_mode = #tpu.pipeline_mode<synchronous>, transform_indices = @transform_7, window_bounds = array<i64: 9, 256>}, {transform_indices = @transform_8, window_bounds = array<i64: 8, 32, 256>}]} {
    %c0 = arith.constant 0 : index
    %c0_0 = arith.constant 0 : index
    %c0_1 = arith.constant 0 : index
    %0 = vector.load %arg1[%c0, %c0_0, %c0_1] : memref<8x32x256xf32, #tpu.memory_space<vmem>>, vector<8x32x256xf32>
    %cst = arith.constant dense<0.000000e+00> : vector<8x32xf32>
    %1 = vector.multi_reduction <add>, %0, %cst [2] : vector<8x32x256xf32> to vector<8x32xf32>
    %cst_2 = arith.constant 3.906250e-03 : f32
    %2 = vector.broadcast %cst_2 : f32 to vector<8x32xf32>
    %3 = arith.mulf %1, %2 : vector<8x32xf32>
    %cst_3 = arith.constant dense<0xFF800000> : vector<8x32xf32>
    %4 = vector.multi_reduction <maximumf>, %0, %cst_3 [2] : vector<8x32x256xf32> to vector<8x32xf32>
    %5 = tpu.concatenate %3, %4 in 0 : vector<8x32xf32>, vector<8x32xf32> -> vector<16x32xf32>
    %c0_4 = arith.constant 0 : index
    %c0_5 = arith.constant 0 : index
    %6 = vector.load %arg2[%c0_4, %c0_5] : memref<32x2xf32, #tpu.memory_space<vmem>>, vector<32x2xf32>
    %c0_6 = arith.constant 0 : index
    %c0_7 = arith.constant 0 : index
    %7 = vector.load %arg4[%c0_6, %c0_7] : memref<2x32xf32, #tpu.memory_space<vmem>>, vector<2x32xf32>
    %cst_8 = arith.constant dense<0.000000e+00> : vector<16x2xf32>
    %8 = tpu.matmul %5, %6, %cst_8 {dimension_numbers = #tpu.dot_dimension_numbers<[1], [0], [0], [1], [0, 0, 1, 1], [], []>} : vector<16x32xf32>, vector<32x2xf32>, vector<16x2xf32> -> vector<16x2xf32>
    %c0_9 = arith.constant 0 : index
    %c0_10 = arith.constant 0 : index
    %9 = vector.load %arg3[%c0_9, %c0_10] : memref<1x2xf32, #tpu.memory_space<vmem>>, vector<1x2xf32>
    %10 = vector.broadcast %9 : vector<1x2xf32> to vector<16x2xf32>
    %11 = arith.addf %8, %10 : vector<16x2xf32>
    %cst_11 = arith.constant 0.000000e+00 : f32
    %12 = vector.broadcast %cst_11 : f32 to vector<16x2xf32>
    %13 = arith.maximumf %11, %12 : vector<16x2xf32>
    %cst_12 = arith.constant dense<0.000000e+00> : vector<16x32xf32>
    %14 = tpu.matmul %13, %7, %cst_12 {dimension_numbers = #tpu.dot_dimension_numbers<[1], [0], [0], [1], [0, 0, 1, 1], [], []>} : vector<16x2xf32>, vector<2x32xf32>, vector<16x32xf32> -> vector<16x32xf32>
    %c0_13 = arith.constant 0 : index
    %c0_14 = arith.constant 0 : index
    %15 = vector.load %arg5[%c0_13, %c0_14] : memref<1x32xf32, #tpu.memory_space<vmem>>, vector<1x32xf32>
    %16 = vector.broadcast %15 : vector<1x32xf32> to vector<16x32xf32>
    %17 = arith.addf %14, %16 : vector<16x32xf32>
    %18 = vector.extract_strided_slice %17 {offsets = [0, 0], sizes = [8, 32], strides = [1, 1]} : vector<16x32xf32> to vector<8x32xf32>
    %19 = vector.extract_strided_slice %17 {offsets = [8, 0], sizes = [8, 32], strides = [1, 1]} : vector<16x32xf32> to vector<8x32xf32>
    %20 = arith.addf %18, %19 : vector<8x32xf32>
    %21 = arith.negf %20 : vector<8x32xf32>
    %22 = math.exp %21 : vector<8x32xf32>
    %cst_15 = arith.constant 1.000000e+00 : f32
    %23 = vector.broadcast %cst_15 : f32 to vector<8x32xf32>
    %24 = arith.addf %23, %22 : vector<8x32xf32>
    %25 = arith.divf %23, %24 : vector<8x32xf32>
    %26 = vector.shape_cast %25 : vector<8x32xf32> to vector<8x32x1xf32>
    %27 = vector.broadcast %26 : vector<8x32x1xf32> to vector<8x32x256xf32>
    %28 = arith.mulf %0, %27 : vector<8x32x256xf32>
    %cst_16 = arith.constant dense<0.000000e+00> : vector<8x256xf32>
    %29 = vector.multi_reduction <add>, %28, %cst_16 [1] : vector<8x32x256xf32> to vector<8x256xf32>
    %cst_17 = arith.constant 3.125000e-02 : f32
    %30 = vector.broadcast %cst_17 : f32 to vector<8x256xf32>
    %31 = arith.mulf %29, %30 : vector<8x256xf32>
    %cst_18 = arith.constant dense<0xFF800000> : vector<8x256xf32>
    %32 = vector.multi_reduction <maximumf>, %28, %cst_18 [1] : vector<8x32x256xf32> to vector<8x256xf32>
    %33 = tpu.concatenate %31, %32 in 0 : vector<8x256xf32>, vector<8x256xf32> -> vector<16x256xf32>
    %34 = tpu.iota {dimensions = array<i32: 0>} : vector<16x1xi32>
    %c8_i32 = arith.constant 8 : i32
    %35 = vector.broadcast %c8_i32 : i32 to vector<16x1xi32>
    %36 = arith.cmpi slt, %34, %35 : vector<16x1xi32>
    %cst_19 = arith.constant 0.000000e+00 : f32
    %37 = vector.broadcast %cst_19 : f32 to vector<16x256xf32>
    %c17_i32 = arith.constant 17 : i32
    %38 = tpu.dynamic_rotate %33 by %c17_i32 dim 1 : vector<16x256xf32>, i32 -> vector<16x256xf32>
    %c0_20 = arith.constant 0 : index
    %39 = memref.load %arg6[%c0_20] : memref<18xf32, #tpu.memory_space<smem>>
    %c9 = arith.constant 9 : index
    %40 = memref.load %arg6[%c9] : memref<18xf32, #tpu.memory_space<smem>>
    %41 = vector.broadcast %39 : f32 to vector<16x1xf32>
    %42 = vector.broadcast %40 : f32 to vector<16x1xf32>
    %43 = arith.select %36, %41, %42 : vector<16x1xi1>, vector<16x1xf32>
    %c0_21 = arith.constant 0 : index
    %c0_22 = arith.constant 0 : index
    %44 = vector.load %arg8[%c0_21, %c0_22] : memref<9x256xf32, #tpu.memory_space<vmem>>, vector<1x256xf32>
    %45 = vector.broadcast %43 : vector<16x1xf32> to vector<16x256xf32>
    %46 = arith.mulf %45, %38 : vector<16x256xf32>
    %47 = vector.broadcast %44 : vector<1x256xf32> to vector<16x256xf32>
    %48 = arith.mulf %47, %46 : vector<16x256xf32>
    %49 = arith.addf %37, %48 : vector<16x256xf32>
    %c16_i32 = arith.constant 16 : i32
    %50 = tpu.dynamic_rotate %33 by %c16_i32 dim 1 : vector<16x256xf32>, i32 -> vector<16x256xf32>
    %c1 = arith.constant 1 : index
    %51 = memref.load %arg6[%c1] : memref<18xf32, #tpu.memory_space<smem>>
    %c10 = arith.constant 10 : index
    %52 = memref.load %arg6[%c10] : memref<18xf32, #tpu.memory_space<smem>>
    %53 = vector.broadcast %51 : f32 to vector<16x1xf32>
    %54 = vector.broadcast %52 : f32 to vector<16x1xf32>
    %55 = arith.select %36, %53, %54 : vector<16x1xi1>, vector<16x1xf32>
    %c1_23 = arith.constant 1 : index
    %c0_24 = arith.constant 0 : index
    %56 = vector.load %arg8[%c1_23, %c0_24] : memref<9x256xf32, #tpu.memory_space<vmem>>, vector<1x256xf32>
    %57 = vector.broadcast %55 : vector<16x1xf32> to vector<16x256xf32>
    %58 = arith.mulf %57, %50 : vector<16x256xf32>
    %59 = vector.broadcast %56 : vector<1x256xf32> to vector<16x256xf32>
    %60 = arith.mulf %59, %58 : vector<16x256xf32>
    %61 = arith.addf %49, %60 : vector<16x256xf32>
    %c15_i32 = arith.constant 15 : i32
    %62 = tpu.dynamic_rotate %33 by %c15_i32 dim 1 : vector<16x256xf32>, i32 -> vector<16x256xf32>
    %c2 = arith.constant 2 : index
    %63 = memref.load %arg6[%c2] : memref<18xf32, #tpu.memory_space<smem>>
    %c11 = arith.constant 11 : index
    %64 = memref.load %arg6[%c11] : memref<18xf32, #tpu.memory_space<smem>>
    %65 = vector.broadcast %63 : f32 to vector<16x1xf32>
    %66 = vector.broadcast %64 : f32 to vector<16x1xf32>
    %67 = arith.select %36, %65, %66 : vector<16x1xi1>, vector<16x1xf32>
    %c2_25 = arith.constant 2 : index
    %c0_26 = arith.constant 0 : index
    %68 = vector.load %arg8[%c2_25, %c0_26] : memref<9x256xf32, #tpu.memory_space<vmem>>, vector<1x256xf32>
    %69 = vector.broadcast %67 : vector<16x1xf32> to vector<16x256xf32>
    %70 = arith.mulf %69, %62 : vector<16x256xf32>
    %71 = vector.broadcast %68 : vector<1x256xf32> to vector<16x256xf32>
    %72 = arith.mulf %71, %70 : vector<16x256xf32>
    %73 = arith.addf %61, %72 : vector<16x256xf32>
    %c1_i32 = arith.constant 1 : i32
    %74 = tpu.dynamic_rotate %33 by %c1_i32 dim 1 : vector<16x256xf32>, i32 -> vector<16x256xf32>
    %c3 = arith.constant 3 : index
    %75 = memref.load %arg6[%c3] : memref<18xf32, #tpu.memory_space<smem>>
    %c12 = arith.constant 12 : index
    %76 = memref.load %arg6[%c12] : memref<18xf32, #tpu.memory_space<smem>>
    %77 = vector.broadcast %75 : f32 to vector<16x1xf32>
    %78 = vector.broadcast %76 : f32 to vector<16x1xf32>
    %79 = arith.select %36, %77, %78 : vector<16x1xi1>, vector<16x1xf32>
    %c3_27 = arith.constant 3 : index
    %c0_28 = arith.constant 0 : index
    %80 = vector.load %arg8[%c3_27, %c0_28] : memref<9x256xf32, #tpu.memory_space<vmem>>, vector<1x256xf32>
    %81 = vector.broadcast %79 : vector<16x1xf32> to vector<16x256xf32>
    %82 = arith.mulf %81, %74 : vector<16x256xf32>
    %83 = vector.broadcast %80 : vector<1x256xf32> to vector<16x256xf32>
    %84 = arith.mulf %83, %82 : vector<16x256xf32>
    %85 = arith.addf %73, %84 : vector<16x256xf32>
    %c4 = arith.constant 4 : index
    %86 = memref.load %arg6[%c4] : memref<18xf32, #tpu.memory_space<smem>>
    %c13 = arith.constant 13 : index
    %87 = memref.load %arg6[%c13] : memref<18xf32, #tpu.memory_space<smem>>
    %88 = vector.broadcast %86 : f32 to vector<16x1xf32>
    %89 = vector.broadcast %87 : f32 to vector<16x1xf32>
    %90 = arith.select %36, %88, %89 : vector<16x1xi1>, vector<16x1xf32>
    %c4_29 = arith.constant 4 : index
    %c0_30 = arith.constant 0 : index
    %91 = vector.load %arg8[%c4_29, %c0_30] : memref<9x256xf32, #tpu.memory_space<vmem>>, vector<1x256xf32>
    %92 = vector.broadcast %90 : vector<16x1xf32> to vector<16x256xf32>
    %93 = arith.mulf %92, %33 : vector<16x256xf32>
    %94 = vector.broadcast %91 : vector<1x256xf32> to vector<16x256xf32>
    %95 = arith.mulf %94, %93 : vector<16x256xf32>
    %96 = arith.addf %85, %95 : vector<16x256xf32>
    %c255_i32 = arith.constant 255 : i32
    %97 = tpu.dynamic_rotate %33 by %c255_i32 dim 1 : vector<16x256xf32>, i32 -> vector<16x256xf32>
    %c5 = arith.constant 5 : index
    %98 = memref.load %arg6[%c5] : memref<18xf32, #tpu.memory_space<smem>>
    %c14 = arith.constant 14 : index
    %99 = memref.load %arg6[%c14] : memref<18xf32, #tpu.memory_space<smem>>
    %100 = vector.broadcast %98 : f32 to vector<16x1xf32>
    %101 = vector.broadcast %99 : f32 to vector<16x1xf32>
    %102 = arith.select %36, %100, %101 : vector<16x1xi1>, vector<16x1xf32>
    %c5_31 = arith.constant 5 : index
    %c0_32 = arith.constant 0 : index
    %103 = vector.load %arg8[%c5_31, %c0_32] : memref<9x256xf32, #tpu.memory_space<vmem>>, vector<1x256xf32>
    %104 = vector.broadcast %102 : vector<16x1xf32> to vector<16x256xf32>
    %105 = arith.mulf %104, %97 : vector<16x256xf32>
    %106 = vector.broadcast %103 : vector<1x256xf32> to vector<16x256xf32>
    %107 = arith.mulf %106, %105 : vector<16x256xf32>
    %108 = arith.addf %96, %107 : vector<16x256xf32>
    %c241_i32 = arith.constant 241 : i32
    %109 = tpu.dynamic_rotate %33 by %c241_i32 dim 1 : vector<16x256xf32>, i32 -> vector<16x256xf32>
    %c6 = arith.constant 6 : index
    %110 = memref.load %arg6[%c6] : memref<18xf32, #tpu.memory_space<smem>>
    %c15 = arith.constant 15 : index
    %111 = memref.load %arg6[%c15] : memref<18xf32, #tpu.memory_space<smem>>
    %112 = vector.broadcast %110 : f32 to vector<16x1xf32>
    %113 = vector.broadcast %111 : f32 to vector<16x1xf32>
    %114 = arith.select %36, %112, %113 : vector<16x1xi1>, vector<16x1xf32>
    %c6_33 = arith.constant 6 : index
    %c0_34 = arith.constant 0 : index
    %115 = vector.load %arg8[%c6_33, %c0_34] : memref<9x256xf32, #tpu.memory_space<vmem>>, vector<1x256xf32>
    %116 = vector.broadcast %114 : vector<16x1xf32> to vector<16x256xf32>
    %117 = arith.mulf %116, %109 : vector<16x256xf32>
    %118 = vector.broadcast %115 : vector<1x256xf32> to vector<16x256xf32>
    %119 = arith.mulf %118, %117 : vector<16x256xf32>
    %120 = arith.addf %108, %119 : vector<16x256xf32>
    %c240_i32 = arith.constant 240 : i32
    %121 = tpu.dynamic_rotate %33 by %c240_i32 dim 1 : vector<16x256xf32>, i32 -> vector<16x256xf32>
    %c7 = arith.constant 7 : index
    %122 = memref.load %arg6[%c7] : memref<18xf32, #tpu.memory_space<smem>>
    %c16 = arith.constant 16 : index
    %123 = memref.load %arg6[%c16] : memref<18xf32, #tpu.memory_space<smem>>
    %124 = vector.broadcast %122 : f32 to vector<16x1xf32>
    %125 = vector.broadcast %123 : f32 to vector<16x1xf32>
    %126 = arith.select %36, %124, %125 : vector<16x1xi1>, vector<16x1xf32>
    %c7_35 = arith.constant 7 : index
    %c0_36 = arith.constant 0 : index
    %127 = vector.load %arg8[%c7_35, %c0_36] : memref<9x256xf32, #tpu.memory_space<vmem>>, vector<1x256xf32>
    %128 = vector.broadcast %126 : vector<16x1xf32> to vector<16x256xf32>
    %129 = arith.mulf %128, %121 : vector<16x256xf32>
    %130 = vector.broadcast %127 : vector<1x256xf32> to vector<16x256xf32>
    %131 = arith.mulf %130, %129 : vector<16x256xf32>
    %132 = arith.addf %120, %131 : vector<16x256xf32>
    %c239_i32 = arith.constant 239 : i32
    %133 = tpu.dynamic_rotate %33 by %c239_i32 dim 1 : vector<16x256xf32>, i32 -> vector<16x256xf32>
    %c8 = arith.constant 8 : index
    %134 = memref.load %arg6[%c8] : memref<18xf32, #tpu.memory_space<smem>>
    %c17 = arith.constant 17 : index
    %135 = memref.load %arg6[%c17] : memref<18xf32, #tpu.memory_space<smem>>
    %136 = vector.broadcast %134 : f32 to vector<16x1xf32>
    %137 = vector.broadcast %135 : f32 to vector<16x1xf32>
    %138 = arith.select %36, %136, %137 : vector<16x1xi1>, vector<16x1xf32>
    %c8_37 = arith.constant 8 : index
    %c0_38 = arith.constant 0 : index
    %139 = vector.load %arg8[%c8_37, %c0_38] : memref<9x256xf32, #tpu.memory_space<vmem>>, vector<1x256xf32>
    %140 = vector.broadcast %138 : vector<16x1xf32> to vector<16x256xf32>
    %141 = arith.mulf %140, %133 : vector<16x256xf32>
    %142 = vector.broadcast %139 : vector<1x256xf32> to vector<16x256xf32>
    %143 = arith.mulf %142, %141 : vector<16x256xf32>
    %144 = arith.addf %132, %143 : vector<16x256xf32>
    %145 = vector.extract_strided_slice %144 {offsets = [0, 0], sizes = [8, 256], strides = [1, 1]} : vector<16x256xf32> to vector<8x256xf32>
    %146 = vector.extract_strided_slice %144 {offsets = [8, 0], sizes = [8, 256], strides = [1, 1]} : vector<16x256xf32> to vector<8x256xf32>
    %147 = arith.addf %145, %146 : vector<8x256xf32>
    %c0_39 = arith.constant 0 : index
    %148 = memref.load %arg7[%c0_39] : memref<1xf32, #tpu.memory_space<smem>>
    %149 = vector.broadcast %148 : f32 to vector<8x256xf32>
    %150 = arith.addf %147, %149 : vector<8x256xf32>
    %151 = arith.negf %150 : vector<8x256xf32>
    %152 = math.exp %151 : vector<8x256xf32>
    %cst_40 = arith.constant 1.000000e+00 : f32
    %153 = vector.broadcast %cst_40 : f32 to vector<8x256xf32>
    %154 = arith.addf %153, %152 : vector<8x256xf32>
    %155 = arith.divf %153, %154 : vector<8x256xf32>
    %156 = vector.shape_cast %155 : vector<8x256xf32> to vector<8x1x256xf32>
    %157 = vector.broadcast %156 : vector<8x1x256xf32> to vector<8x32x256xf32>
    %158 = arith.mulf %28, %157 : vector<8x32x256xf32>
    %c0_41 = arith.constant 0 : index
    %c0_42 = arith.constant 0 : index
    %c0_43 = arith.constant 0 : index
    %159 = vector.load %arg9[%c0_41, %c0_42, %c0_43] : memref<8x32x256xf32, #tpu.memory_space<vmem>>, vector<8x32x256xf32>
    tpu.vector_store %arg9[%c0_41, %c0_42, %c0_43], %158 {strides = array<i32>} : memref<8x32x256xf32, #tpu.memory_space<vmem>>, vector<8x32x256xf32>,
    return
  }
  func.func @transform_0(%arg0: i32) -> (i32, i32, i32) {
    %c0_i32 = arith.constant 0 : i32
    %c0_i32_0 = arith.constant 0 : i32
    %c0_i32_1 = arith.constant 0 : i32
    return %arg0, %c0_i32, %c0_i32_0 : i32, i32, i32
  }
  func.func @transform_1(%arg0: i32) -> (i32, i32) {
    %c0_i32 = arith.constant 0 : i32
    %c0_i32_0 = arith.constant 0 : i32
    %c0_i32_1 = arith.constant 0 : i32
    return %c0_i32, %c0_i32_0 : i32, i32
  }
  func.func @transform_2(%arg0: i32) -> (i32, i32) {
    %c0_i32 = arith.constant 0 : i32
    %c0_i32_0 = arith.constant 0 : i32
    %c0_i32_1 = arith.constant 0 : i32
    return %c0_i32, %c0_i32_0 : i32, i32
  }
  func.func @transform_3(%arg0: i32) -> (i32, i32) {
    %c0_i32 = arith.constant 0 : i32
    %c0_i32_0 = arith.constant 0 : i32
    %c0_i32_1 = arith.constant 0 : i32
    return %c0_i32, %c0_i32_0 : i32, i32
  }
  func.func @transform_4(%arg0: i32) -> (i32, i32) {
    %c0_i32 = arith.constant 0 : i32
    %c0_i32_0 = arith.constant 0 : i32
    %c0_i32_1 = arith.constant 0 : i32
    return %c0_i32, %c0_i32_0 : i32, i32
  }
  func.func @transform_5(%arg0: i32) -> i32 {
    %c0_i32 = arith.constant 0 : i32
    %c0_i32_0 = arith.constant 0 : i32
    return %c0_i32 : i32
  }
  func.func @transform_6(%arg0: i32) -> i32 {
    %c0_i32 = arith.constant 0 : i32
    %c0_i32_0 = arith.constant 0 : i32
    return %c0_i32 : i32
  }
  func.func @transform_7(%arg0: i32) -> (i32, i32) {
    %c0_i32 = arith.constant 0 : i32
    %c0_i32_0 = arith.constant 0 : i32
    %c0_i32_1 = arith.constant 0 : i32
    return %c0_i32, %c0_i32_0 : i32, i32
  }
  func.func @transform_8(%arg0: i32) -> (i32, i32, i32) {
    %c0_i32 = arith.constant 0 : i32
    %c0_i32_0 = arith.constant 0 : i32
    %c0_i32_1 = arith.constant 0 : i32
    return %arg0, %c0_i32, %c0_i32_0 : i32, i32, i32
  }
}

</mosaic_0001>

<llo_original>
// kernel: tpu_custom_call.1
$region0: #{tpu_custom_call.1}
  #allocation0 [shape = 'u32[]', space=smem, size = 0x4, offset = 0x4, fixed_abs, tag = 'smem constant byte address 0x4 - core index']
  #allocation1 [shape = 'u32[144,128]{1,0:T(1,128)}', space=vmem, size = 0x12000, scoped, tag = 'internal scratch']
  #allocation2 [shape = 'f32[1]{0:T(128)S(6)}', space=smem, size = 0x200, scoped, tag = 'scoped memory for tpu_custom_call.1']
  %s0 = inlined_call_operand.hbm [shape: f32[8,32,256], index: 0, kind: input, shape index: {}]
  %s1 = inlined_call_operand.hbm [shape: f32[32,2], index: 1, kind: input, shape index: {}]
  %s2 = inlined_call_operand.hbm [shape: f32[1,2], index: 2, kind: input, shape index: {}]
  %s3 = inlined_call_operand.hbm [shape: f32[2,32], index: 3, kind: input, shape index: {}]
  %s4 = inlined_call_operand.hbm [shape: f32[1,32], index: 4, kind: input, shape index: {}]
  %s5 = inlined_call_operand.hbm [shape: f32[18], index: 5, kind: input, shape index: {}]
  %s6 = inlined_call_operand.<no memory space> [shape: f32[1], index: 6, kind: input, shape index: {}]
  %s7 = inlined_call_operand.hbm [shape: f32[9,256], index: 7, kind: input, shape index: {}]
  %s8 = inlined_call_operand.hbm [shape: f32[8,32,256], index: 8, kind: output, shape index: {}]
  %s9 = sld [smem:[#allocation0]]
  $region70: #{tpu_custom_call.1} parent=0
    _
  %s11 = ssub.s32 1, %s9
  %s12 = scalar_select 0, %s11, %s9
  %13 = sst [smem:[#allocation2]] %s6
  $region1: #{tpu_custom_call.1} parent=0
    #allocation3 [shape = 'u8[262144]{0}', space=vmem, size = 0x40000, scoped, tag = 'input window, operand 0, single buffered']
    #allocation4 [shape = 's32[1]{0}', space=sflag, size = 0x4, scoped, tag = 'scoped memory for tpu_custom_call.1']
    #allocation5 [shape = 's32[1]{0}', space=sflag, size = 0x4, scoped, tag = 'scoped memory for tpu_custom_call.1']
    #allocation6 [shape = 's32[1]{0}', space=sflag, size = 0x4, scoped, tag = 'scoped memory for tpu_custom_call.1']
    #allocation7 [shape = 'u8[16384]{0}', space=vmem, size = 0x4000, scoped, tag = 'input window, operand 1, single buffered']
    #allocation8 [shape = 's32[1]{0}', space=sflag, size = 0x4, scoped, tag = 'scoped memory for tpu_custom_call.1']
    #allocation9 [shape = 'u8[512]{0}', space=vmem, size = 0x400, scoped, tag = 'input window, operand 2, single buffered']
    #allocation10 [shape = 'u8[1024]{0}', space=vmem, size = 0x400, scoped, tag = 'input window, operand 3, single buffered']
    #allocation11 [shape = 's32[1]{0}', space=sflag, size = 0x4, scoped, tag = 'scoped memory for tpu_custom_call.1']
    #allocation12 [shape = 'u8[512]{0}', space=vmem, size = 0x400, scoped, tag = 'input window, operand 4, single buffered']
    #allocation13 [shape = 'u8[512]{0}', space=smem, size = 0x200, scoped, tag = 'input window, operand 5, single buffered']
    #allocation14 [shape = 'u8[16384]{0}', space=vmem, size = 0x4000, scoped, tag = 'input window, operand 7, single buffered']
    #allocation15 [shape = 's32[1]{0}', space=sflag, size = 0x4, scoped, tag = 'scoped memory for tpu_custom_call.1']
    #allocation16 [shape = 'u8[262144]{0}', space=vmem, size = 0x40000, scoped, tag = 'output window, operand 0, single buffered']
    %14 = vsyncpa [#allocation4], 0
    %15 = vsyncpa [#allocation8], 0
    %16 = vsyncpa [#allocation11], 0
    %17 = vsyncpa [#allocation6], 0
    %18 = vsyncpa [#allocation15], 0
    %19 = vsyncpa [#allocation5], 0
    // Predicated region
    $region2: #{tpu_custom_call.1} parent=1 // pred_check
      _
    $region3: #{tpu_custom_call.1} parent=1 // pred_check_branch
      %21 = sbr.rel (0) target = $region5
    $region4: #{tpu_custom_call.1} parent=1 // pred_region
      %s23 = ssub.s32 8192, 8192
      %24 = vsyncadd [#allocation4], %s23
      %s25 = sshll.u32 [#allocation3], 4
      %s26 = int_to_ptr.vmem [resolvable:$true] %s25
      %31 = dma.hbm_to_vmem [thread:$0]  %s0, 8192, %s26, [#allocation4], 256, 256, 16
    $region5: #{tpu_custom_call.1} parent=1 // pred_fallthru
      _
    // Predicated region
    $region6: #{tpu_custom_call.1} parent=1 // pred_check
      _
    $region7: #{tpu_custom_call.1} parent=1 // pred_check_branch
      %33 = sbr.rel (0) target = $region9
    $region8: #{tpu_custom_call.1} parent=1 // pred_region
      %s35 = ssub.s32 512, 512
      %36 = vsyncadd [#allocation8], %s35
      %s37 = sshll.u32 [#allocation7], 4
      %s38 = int_to_ptr.vmem [resolvable:$true] %s37
      %43 = dma.hbm_to_vmem [thread:$0]  %s1, 512, %s38, [#allocation8], 128, 128, 8
    $region9: #{tpu_custom_call.1} parent=1 // pred_fallthru
      _
    // Predicated region
    $region10: #{tpu_custom_call.1} parent=1 // pred_check
      _
    $region11: #{tpu_custom_call.1} parent=1 // pred_check_branch
      %45 = sbr.rel (0) target = $region13
    $region12: #{tpu_custom_call.1} parent=1 // pred_region
      %s47 = ssub.s32 16, 16
      %48 = vsyncadd [#allocation8], %s47
      %s50 = sshll.u32 [#allocation9], 4
      %s51 = int_to_ptr.vmem [resolvable:$true] %s50
      %53 = dma.hbm_to_vmem [thread:$0]  %s2, 16, %s51, [#allocation8]
    $region13: #{tpu_custom_call.1} parent=1 // pred_fallthru
      _
    // Predicated region
    $region14: #{tpu_custom_call.1} parent=1 // pred_check
      _
    $region15: #{tpu_custom_call.1} parent=1 // pred_check_branch
      %55 = sbr.rel (0) target = $region17
    $region16: #{tpu_custom_call.1} parent=1 // pred_region
      %s57 = ssub.s32 32, 32
      %58 = vsyncadd [#allocation11], %s57
      %s60 = sshll.u32 [#allocation10], 4
      %s61 = int_to_ptr.vmem [resolvable:$true] %s60
      %63 = dma.hbm_to_vmem [thread:$0]  %s3, 32, %s61, [#allocation11]
    $region17: #{tpu_custom_call.1} parent=1 // pred_fallthru
      _
    // Predicated region
    $region18: #{tpu_custom_call.1} parent=1 // pred_check
      _
    $region19: #{tpu_custom_call.1} parent=1 // pred_check_branch
      %65 = sbr.rel (0) target = $region21
    $region20: #{tpu_custom_call.1} parent=1 // pred_region
      %s67 = ssub.s32 16, 16
      %68 = vsyncadd [#allocation11], %s67
      %s70 = sshll.u32 [#allocation12], 4
      %s71 = int_to_ptr.vmem [resolvable:$true] %s70
      %73 = dma.hbm_to_vmem [thread:$0]  %s4, 16, %s71, [#allocation11]
    $region21: #{tpu_custom_call.1} parent=1 // pred_fallthru
      _
    // Predicated region
    $region22: #{tpu_custom_call.1} parent=1 // pred_check
      _
    $region23: #{tpu_custom_call.1} parent=1 // pred_check_branch
      %75 = sbr.rel (0) target = $region25
    $region24: #{tpu_custom_call.1} parent=1 // pred_region
      %s77 = ssub.s32 16, 16
      %78 = vsyncadd [#allocation6], %s77
      %81 = dma.hbm_to_smem %s5, 16, [#allocation13], [#allocation6]
    $region25: #{tpu_custom_call.1} parent=1 // pred_fallthru
      _
    // Predicated region
    $region26: #{tpu_custom_call.1} parent=1 // pred_check
      _
    $region27: #{tpu_custom_call.1} parent=1 // pred_check_branch
      %83 = sbr.rel (0) target = $region29
    $region28: #{tpu_custom_call.1} parent=1 // pred_region
      _
    $region29: #{tpu_custom_call.1} parent=1 // pred_fallthru
      _
    // Predicated region
    $region30: #{tpu_custom_call.1} parent=1 // pred_check
      _
    $region31: #{tpu_custom_call.1} parent=1 // pred_check_branch
      %85 = sbr.rel (0) target = $region33
    $region32: #{tpu_custom_call.1} parent=1 // pred_region
      %s87 = ssub.s32 512, 512
      %88 = vsyncadd [#allocation15], %s87
      %s89 = sshll.u32 [#allocation14], 4
      %s90 = int_to_ptr.vmem [resolvable:$true] %s89
      %95 = dma.hbm_to_vmem [thread:$0]  %s7, 512, %s90, [#allocation15], 256, 256, 16
    $region33: #{tpu_custom_call.1} parent=1 // pred_fallthru
      _
    // Predicated region
    $region34: #{tpu_custom_call.1} parent=1 // pred_check
      _
    $region35: #{tpu_custom_call.1} parent=1 // pred_check_branch
      %97 = sbr.rel (0) target = $region37
    $region36: #{tpu_custom_call.1} parent=1 // pred_region
      %98 = dma.done [#allocation4], 8192
    $region37: #{tpu_custom_call.1} parent=1 // pred_fallthru
      _
    // Predicated region
    $region38: #{tpu_custom_call.1} parent=1 // pred_check
      _
    $region39: #{tpu_custom_call.1} parent=1 // pred_check_branch
      %100 = sbr.rel (0) target = $region41
    $region40: #{tpu_custom_call.1} parent=1 // pred_region
      %101 = dma.done [#allocation8], 512
    $region41: #{tpu_custom_call.1} parent=1 // pred_fallthru
      _
    // Predicated region
    $region42: #{tpu_custom_call.1} parent=1 // pred_check
      _
    $region43: #{tpu_custom_call.1} parent=1 // pred_check_branch
      %103 = sbr.rel (0) target = $region45
    $region44: #{tpu_custom_call.1} parent=1 // pred_region
      %104 = dma.done [#allocation8], 16
    $region45: #{tpu_custom_call.1} parent=1 // pred_fallthru
      _
    // Predicated region
    $region46: #{tpu_custom_call.1} parent=1 // pred_check
      _
    $region47: #{tpu_custom_call.1} parent=1 // pred_check_branch
      %106 = sbr.rel (0) target = $region49
    $region48: #{tpu_custom_call.1} parent=1 // pred_region
      %107 = dma.done [#allocation11], 32
    $region49: #{tpu_custom_call.1} parent=1 // pred_fallthru
      _
    // Predicated region
    $region50: #{tpu_custom_call.1} parent=1 // pred_check
      _
    $region51: #{tpu_custom_call.1} parent=1 // pred_check_branch
      %109 = sbr.rel (0) target = $region53
    $region52: #{tpu_custom_call.1} parent=1 // pred_region
      %110 = dma.done [#allocation11], 16
    $region53: #{tpu_custom_call.1} parent=1 // pred_fallthru
      _
    // Predicated region
    $region54: #{tpu_custom_call.1} parent=1 // pred_check
      _
    $region55: #{tpu_custom_call.1} parent=1 // pred_check_branch
      %112 = sbr.rel (0) target = $region57
    $region56: #{tpu_custom_call.1} parent=1 // pred_region
      %113 = dma.done [#allocation6], 16
    $region57: #{tpu_custom_call.1} parent=1 // pred_fallthru
      _
    // Predicated region
    $region58: #{tpu_custom_call.1} parent=1 // pred_check
      _
    $region59: #{tpu_custom_call.1} parent=1 // pred_check_branch
      %115 = sbr.rel (0) target = $region61
    $region60: #{tpu_custom_call.1} parent=1 // pred_region
      %116 = dma.done [#allocation15], 512
    $region61: #{tpu_custom_call.1} parent=1 // pred_fallthru
      _
    %117 = sfence
    %v118 = vld [vmem:[#allocation3] sm:$0xff]
    %v119 = vld [vmem:[#allocation3 + $0x8] sm:$0xff]
    %v120 = vld [vmem:[#allocation3 + $0x10] sm:$0xff]
    %v121 = vld [vmem:[#allocation3 + $0x18] sm:$0xff]
    %v122 = vld [vmem:[#allocation3 + $0x20] sm:$0xff]
    %v123 = vld [vmem:[#allocation3 + $0x28] sm:$0xff]
    %v124 = vld [vmem:[#allocation3 + $0x30] sm:$0xff]
    %v125 = vld [vmem:[#allocation3 + $0x38] sm:$0xff]
    %v126 = vld [vmem:[#allocation3 + $0x40] sm:$0xff]
    %v127 = vld [vmem:[#allocation3 + $0x48] sm:$0xff]
    %v128 = vld [vmem:[#allocation3 + $0x50] sm:$0xff]
    %v129 = vld [vmem:[#allocation3 + $0x58] sm:$0xff]
    %v130 = vld [vmem:[#allocation3 + $0x60] sm:$0xff]
    %v131 = vld [vmem:[#allocation3 + $0x68] sm:$0xff]
    %v132 = vld [vmem:[#allocation3 + $0x70] sm:$0xff]
    %v133 = vld [vmem:[#allocation3 + $0x78] sm:$0xff]
    %v134 = vld [vmem:[#allocation3 + $0x80] sm:$0xff]
    %v135 = vld [vmem:[#allocation3 + $0x88] sm:$0xff]
    %v136 = vld [vmem:[#allocation3 + $0x90] sm:$0xff]
    %v137 = vld [vmem:[#allocation3 + $0x98] sm:$0xff]
    %v138 = vld [vmem:[#allocation3 + $0xa0] sm:$0xff]
    %v139 = vld [vmem:[#allocation3 + $0xa8] sm:$0xff]
    %v140 = vld [vmem:[#allocation3 + $0xb0] sm:$0xff]
    %v141 = vld [vmem:[#allocation3 + $0xb8] sm:$0xff]
    %v142 = vld [vmem:[#allocation3 + $0xc0] sm:$0xff]
    %v143 = vld [vmem:[#allocation3 + $0xc8] sm:$0xff]
    %v144 = vld [vmem:[#allocation3 + $0xd0] sm:$0xff]
    %v145 = vld [vmem:[#allocation3 + $0xd8] sm:$0xff]
    %v146 = vld [vmem:[#allocation3 + $0xe0] sm:$0xff]
    %v147 = vld [vmem:[#allocation3 + $0xe8] sm:$0xff]
    %v148 = vld [vmem:[#allocation3 + $0xf0] sm:$0xff]
    %v149 = vld [vmem:[#allocation3 + $0xf8] sm:$0xff]
    %v150 = vld [vmem:[#allocation3 + $0x100] sm:$0xff]
    %v151 = vld [vmem:[#allocation3 + $0x108] sm:$0xff]
    %v152 = vld [vmem:[#allocation3 + $0x110] sm:$0xff]
    %v153 = vld [vmem:[#allocation3 + $0x118] sm:$0xff]
    %v154 = vld [vmem:[#allocation3 + $0x120] sm:$0xff]
    %v155 = vld [vmem:[#allocation3 + $0x128] sm:$0xff]
    %v156 = vld [vmem:[#allocation3 + $0x130] sm:$0xff]
    %v157 = vld [vmem:[#allocation3 + $0x138] sm:$0xff]
    %v158 = vld [vmem:[#allocation3 + $0x140] sm:$0xff]
    %v159 = vld [vmem:[#allocation3 + $0x148] sm:$0xff]
    %v160 = vld [vmem:[#allocation3 + $0x150] sm:$0xff]
    %v161 = vld [vmem:[#allocation3 + $0x158] sm:$0xff]
    %v162 = vld [vmem:[#allocation3 + $0x160] sm:$0xff]
    %v163 = vld [vmem:[#allocation3 + $0x168] sm:$0xff]
    %v164 = vld [vmem:[#allocation3 + $0x170] sm:$0xff]
    %v165 = vld [vmem:[#allocation3 + $0x178] sm:$0xff]
    %v166 = vld [vmem:[#allocation3 + $0x180] sm:$0xff]
    %v167 = vld [vmem:[#allocation3 + $0x188] sm:$0xff]
    %v168 = vld [vmem:[#allocation3 + $0x190] sm:$0xff]
    %v169 = vld [vmem:[#allocation3 + $0x198] sm:$0xff]
    %v170 = vld [vmem:[#allocation3 + $0x1a0] sm:$0xff]
    %v171 = vld [vmem:[#allocation3 + $0x1a8] sm:$0xff]
    %v172 = vld [vmem:[#allocation3 + $0x1b0] sm:$0xff]
    %v173 = vld [vmem:[#allocation3 + $0x1b8] sm:$0xff]
    %v174 = vld [vmem:[#allocation3 + $0x1c0] sm:$0xff]
    %v175 = vld [vmem:[#allocation3 + $0x1c8] sm:$0xff]
    %v176 = vld [vmem:[#allocation3 + $0x1d0] sm:$0xff]
    %v177 = vld [vmem:[#allocation3 + $0x1d8] sm:$0xff]
    %v178 = vld [vmem:[#allocation3 + $0x1e0] sm:$0xff]
    %v179 = vld [vmem:[#allocation3 + $0x1e8] sm:$0xff]
    %v180 = vld [vmem:[#allocation3 + $0x1f0] sm:$0xff]
    %v181 = vld [vmem:[#allocation3 + $0x1f8] sm:$0xff]
    %v182 = vadd.f32 %v118, %v119
    %183 = vadd.xlane.f32.xlu0 %v182
    %v184 = vpop.xlane.xlu0 %183
    %v185 = vadd.f32 %v120, %v121
    %186 = vadd.xlane.f32.xlu0 %v185
    %v187 = vpop.xlane.xlu0 %186
    %v188 = vadd.f32 %v122, %v123
    %189 = vadd.xlane.f32.xlu0 %v188
    %v190 = vpop.xlane.xlu0 %189
    %v191 = vadd.f32 %v124, %v125
    %192 = vadd.xlane.f32.xlu0 %v191
    %v193 = vpop.xlane.xlu0 %192
    %v194 = vadd.f32 %v126, %v127
    %195 = vadd.xlane.f32.xlu0 %v194
    %v196 = vpop.xlane.xlu0 %195
    %v197 = vadd.f32 %v128, %v129
    %198 = vadd.xlane.f32.xlu0 %v197
    %v199 = vpop.xlane.xlu0 %198
    %v200 = vadd.f32 %v130, %v131
    %201 = vadd.xlane.f32.xlu0 %v200
    %v202 = vpop.xlane.xlu0 %201
    %v203 = vadd.f32 %v132, %v133
    %204 = vadd.xlane.f32.xlu0 %v203
    %v205 = vpop.xlane.xlu0 %204
    %v206 = vadd.f32 %v134, %v135
    %207 = vadd.xlane.f32.xlu0 %v206
    %v208 = vpop.xlane.xlu0 %207
    %v209 = vadd.f32 %v136, %v137
    %210 = vadd.xlane.f32.xlu0 %v209
    %v211 = vpop.xlane.xlu0 %210
    %v212 = vadd.f32 %v138, %v139
    %213 = vadd.xlane.f32.xlu0 %v212
    %v214 = vpop.xlane.xlu0 %213
    %v215 = vadd.f32 %v140, %v141
    %216 = vadd.xlane.f32.xlu0 %v215
    %v217 = vpop.xlane.xlu0 %216
    %v218 = vadd.f32 %v142, %v143
    %219 = vadd.xlane.f32.xlu0 %v218
    %v220 = vpop.xlane.xlu0 %219
    %v221 = vadd.f32 %v144, %v145
    %222 = vadd.xlane.f32.xlu0 %v221
    %v223 = vpop.xlane.xlu0 %222
    %v224 = vadd.f32 %v146, %v147
    %225 = vadd.xlane.f32.xlu0 %v224
    %v226 = vpop.xlane.xlu0 %225
    %v227 = vadd.f32 %v148, %v149
    %228 = vadd.xlane.f32.xlu0 %v227
    %v229 = vpop.xlane.xlu0 %228
    %v230 = vadd.f32 %v150, %v151
    %231 = vadd.xlane.f32.xlu0 %v230
    %v232 = vpop.xlane.xlu0 %231
    %v233 = vadd.f32 %v152, %v153
    %234 = vadd.xlane.f32.xlu0 %v233
    %v235 = vpop.xlane.xlu0 %234
    %v236 = vadd.f32 %v154, %v155
    %237 = vadd.xlane.f32.xlu0 %v236
    %v238 = vpop.xlane.xlu0 %237
    %v239 = vadd.f32 %v156, %v157
    %240 = vadd.xlane.f32.xlu0 %v239
    %v241 = vpop.xlane.xlu0 %240
    %v242 = vadd.f32 %v158, %v159
    %243 = vadd.xlane.f32.xlu0 %v242
    %v244 = vpop.xlane.xlu0 %243
    %v245 = vadd.f32 %v160, %v161
    %246 = vadd.xlane.f32.xlu0 %v245
    %v247 = vpop.xlane.xlu0 %246
    %v248 = vadd.f32 %v162, %v163
    %249 = vadd.xlane.f32.xlu0 %v248
    %v250 = vpop.xlane.xlu0 %249
    %v251 = vadd.f32 %v164, %v165
    %252 = vadd.xlane.f32.xlu0 %v251
    %v253 = vpop.xlane.xlu0 %252
    %v254 = vadd.f32 %v166, %v167
    %255 = vadd.xlane.f32.xlu0 %v254
    %v256 = vpop.xlane.xlu0 %255
    %v257 = vadd.f32 %v168, %v169
    %258 = vadd.xlane.f32.xlu0 %v257
    %v259 = vpop.xlane.xlu0 %258
    %v260 = vadd.f32 %v170, %v171
    %261 = vadd.xlane.f32.xlu0 %v260
    %v262 = vpop.xlane.xlu0 %261
    %v263 = vadd.f32 %v172, %v173
    %264 = vadd.xlane.f32.xlu0 %v263
    %v265 = vpop.xlane.xlu0 %264
    %v266 = vadd.f32 %v174, %v175
    %267 = vadd.xlane.f32.xlu0 %v266
    %v268 = vpop.xlane.xlu0 %267
    %v269 = vadd.f32 %v176, %v177
    %270 = vadd.xlane.f32.xlu0 %v269
    %v271 = vpop.xlane.xlu0 %270
    %v272 = vadd.f32 %v178, %v179
    %273 = vadd.xlane.f32.xlu0 %v272
    %v274 = vpop.xlane.xlu0 %273
    %v275 = vadd.f32 %v180, %v181
    %276 = vadd.xlane.f32.xlu0 %v275
    %v277 = vpop.xlane.xlu0 %276
    %v278 = vmul.f32 %v184, 0.00390625
    %v279 = vmul.f32 %v187, 0.00390625
    %v280 = vmul.f32 %v190, 0.00390625
    %v281 = vmul.f32 %v193, 0.00390625
    %v282 = vmul.f32 %v196, 0.00390625
    %v283 = vmul.f32 %v199, 0.00390625
    %v284 = vmul.f32 %v202, 0.00390625
    %v285 = vmul.f32 %v205, 0.00390625
    %v286 = vmul.f32 %v208, 0.00390625
    %v287 = vmul.f32 %v211, 0.00390625
    %v288 = vmul.f32 %v214, 0.00390625
    %v289 = vmul.f32 %v217, 0.00390625
    %v290 = vmul.f32 %v220, 0.00390625
    %v291 = vmul.f32 %v223, 0.00390625
    %v292 = vmul.f32 %v226, 0.00390625
    %v293 = vmul.f32 %v229, 0.00390625
    %v294 = vmul.f32 %v232, 0.00390625
    %v295 = vmul.f32 %v235, 0.00390625
    %v296 = vmul.f32 %v238, 0.00390625
    %v297 = vmul.f32 %v241, 0.00390625
    %v298 = vmul.f32 %v244, 0.00390625
    %v299 = vmul.f32 %v247, 0.00390625
    %v300 = vmul.f32 %v250, 0.00390625
    %v301 = vmul.f32 %v253, 0.00390625
    %v302 = vmul.f32 %v256, 0.00390625
    %v303 = vmul.f32 %v259, 0.00390625
    %v304 = vmul.f32 %v262, 0.00390625
    %v305 = vmul.f32 %v265, 0.00390625
    %v306 = vmul.f32 %v268, 0.00390625
    %v307 = vmul.f32 %v271, 0.00390625
    %v308 = vmul.f32 %v274, 0.00390625
    %v309 = vmul.f32 %v277, 0.00390625
    %v310 = vmax.f32 %v118, %v119
    %311 = vmax.xlane.f32.xlu0 %v310
    %v312 = vpop.xlane.xlu0 %311
    %v313 = vmax.f32 %v120, %v121
    %314 = vmax.xlane.f32.xlu0 %v313
    %v315 = vpop.xlane.xlu0 %314
    %v316 = vmax.f32 %v122, %v123
    %317 = vmax.xlane.f32.xlu0 %v316
    %v318 = vpop.xlane.xlu0 %317
    %v319 = vmax.f32 %v124, %v125
    %320 = vmax.xlane.f32.xlu0 %v319
    %v321 = vpop.xlane.xlu0 %320
    %v322 = vmax.f32 %v126, %v127
    %323 = vmax.xlane.f32.xlu0 %v322
    %v324 = vpop.xlane.xlu0 %323
    %v325 = vmax.f32 %v128, %v129
    %326 = vmax.xlane.f32.xlu0 %v325
    %v327 = vpop.xlane.xlu0 %326
    %v328 = vmax.f32 %v130, %v131
    %329 = vmax.xlane.f32.xlu0 %v328
    %v330 = vpop.xlane.xlu0 %329
    %v331 = vmax.f32 %v132, %v133
    %332 = vmax.xlane.f32.xlu0 %v331
    %v333 = vpop.xlane.xlu0 %332
    %v334 = vmax.f32 %v134, %v135
    %335 = vmax.xlane.f32.xlu0 %v334
    %v336 = vpop.xlane.xlu0 %335
    %v337 = vmax.f32 %v136, %v137
    %338 = vmax.xlane.f32.xlu0 %v337
    %v339 = vpop.xlane.xlu0 %338
    %v340 = vmax.f32 %v138, %v139
    %341 = vmax.xlane.f32.xlu0 %v340
    %v342 = vpop.xlane.xlu0 %341
    %v343 = vmax.f32 %v140, %v141
    %344 = vmax.xlane.f32.xlu0 %v343
    %v345 = vpop.xlane.xlu0 %344
    %v346 = vmax.f32 %v142, %v143
    %347 = vmax.xlane.f32.xlu0 %v346
    %v348 = vpop.xlane.xlu0 %347
    %v349 = vmax.f32 %v144, %v145
    %350 = vmax.xlane.f32.xlu0 %v349
    %v351 = vpop.xlane.xlu0 %350
    %v352 = vmax.f32 %v146, %v147
    %353 = vmax.xlane.f32.xlu0 %v352
    %v354 = vpop.xlane.xlu0 %353
    %v355 = vmax.f32 %v148, %v149
    %356 = vmax.xlane.f32.xlu0 %v355
    %v357 = vpop.xlane.xlu0 %356
    %v358 = vmax.f32 %v150, %v151
    %359 = vmax.xlane.f32.xlu0 %v358
    %v360 = vpop.xlane.xlu0 %359
    %v361 = vmax.f32 %v152, %v153
    %362 = vmax.xlane.f32.xlu0 %v361
    %v363 = vpop.xlane.xlu0 %362
    %v364 = vmax.f32 %v154, %v155
    %365 = vmax.xlane.f32.xlu0 %v364
    %v366 = vpop.xlane.xlu0 %365
    %v367 = vmax.f32 %v156, %v157
    %368 = vmax.xlane.f32.xlu0 %v367
    %v369 = vpop.xlane.xlu0 %368
    %v370 = vmax.f32 %v158, %v159
    %371 = vmax.xlane.f32.xlu0 %v370
    %v372 = vpop.xlane.xlu0 %371
    %v373 = vmax.f32 %v160, %v161
    %374 = vmax.xlane.f32.xlu0 %v373
    %v375 = vpop.xlane.xlu0 %374
    %v376 = vmax.f32 %v162, %v163
    %377 = vmax.xlane.f32.xlu0 %v376
    %v378 = vpop.xlane.xlu0 %377
    %v379 = vmax.f32 %v164, %v165
    %380 = vmax.xlane.f32.xlu0 %v379
    %v381 = vpop.xlane.xlu0 %380
    %v382 = vmax.f32 %v166, %v167
    %383 = vmax.xlane.f32.xlu0 %v382
    %v384 = vpop.xlane.xlu0 %383
    %v385 = vmax.f32 %v168, %v169
    %386 = vmax.xlane.f32.xlu0 %v385
    %v387 = vpop.xlane.xlu0 %386
    %v388 = vmax.f32 %v170, %v171
    %389 = vmax.xlane.f32.xlu0 %v388
    %v390 = vpop.xlane.xlu0 %389
    %v391 = vmax.f32 %v172, %v173
    %392 = vmax.xlane.f32.xlu0 %v391
    %v393 = vpop.xlane.xlu0 %392
    %v394 = vmax.f32 %v174, %v175
    %395 = vmax.xlane.f32.xlu0 %v394
    %v396 = vpop.xlane.xlu0 %395
    %v397 = vmax.f32 %v176, %v177
    %398 = vmax.xlane.f32.xlu0 %v397
    %v399 = vpop.xlane.xlu0 %398
    %v400 = vmax.f32 %v178, %v179
    %401 = vmax.xlane.f32.xlu0 %v400
    %v402 = vpop.xlane.xlu0 %401
    %v403 = vmax.f32 %v180, %v181
    %404 = vmax.xlane.f32.xlu0 %v403
    %v405 = vpop.xlane.xlu0 %404
    %v438 = vlaneseq
    %v439 = vand.u32 %v438, 127
    %v440 = vlaneseq
    %v441 = vshrl.u32 %v440, 7
    %v442 = vsub.s32 %v439, %v441
    %v443 = vrot.slane %v278, %v442
    %v444 = vadd.s32 %v439, 4294967288
    %v445 = vlaneseq
    %v446 = vshrl.u32 %v445, 7
    %v447 = vsub.s32 %v444, %v446
    %v448 = vrot.slane %v279, %v447
    %vm449 = vcmask 130112
    %v450 = vsel %vm449, %v448, %v443
    %v451 = vadd.s32 %v439, 4294967280
    %v452 = vlaneseq
    %v453 = vshrl.u32 %v452, 7
    %v454 = vsub.s32 %v451, %v453
    %v455 = vrot.slane %v280, %v454
    %vm456 = vcmask 195712
    %v457 = vsel %vm456, %v455, %v450
    %v458 = vadd.s32 %v439, 4294967272
    %v459 = vlaneseq
    %v460 = vshrl.u32 %v459, 7
    %v461 = vsub.s32 %v458, %v460
    %v462 = vrot.slane %v281, %v461
    %vm463 = vcmask 261312
    %v464 = vsel %vm463, %v462, %v457
    %v465 = vlaneseq
    %v466 = vshrl.u32 %v465, 7
    %v467 = vsub.s32 %v439, %v466
    %v468 = vrot.slane %v282, %v467
    %v469 = vlaneseq
    %v470 = vshrl.u32 %v469, 7
    %v471 = vsub.s32 %v444, %v470
    %v472 = vrot.slane %v283, %v471
    %v473 = vsel %vm449, %v472, %v468
    %v474 = vlaneseq
    %v475 = vshrl.u32 %v474, 7
    %v476 = vsub.s32 %v451, %v475
    %v477 = vrot.slane %v284, %v476
    %v478 = vsel %vm456, %v477, %v473
    %v479 = vlaneseq
    %v480 = vshrl.u32 %v479, 7
    %v481 = vsub.s32 %v458, %v480
    %v482 = vrot.slane %v285, %v481
    %v483 = vsel %vm463, %v482, %v478
    %v484 = vlaneseq
    %v485 = vshrl.u32 %v484, 7
    %v486 = vsub.s32 %v439, %v485
    %v487 = vrot.slane %v286, %v486
    %v488 = vlaneseq
    %v489 = vshrl.u32 %v488, 7
    %v490 = vsub.s32 %v444, %v489
    %v491 = vrot.slane %v287, %v490
    %v492 = vsel %vm449, %v491, %v487
    %v493 = vlaneseq
    %v494 = vshrl.u32 %v493, 7
    %v495 = vsub.s32 %v451, %v494
    %v496 = vrot.slane %v288, %v495
    %v497 = vsel %vm456, %v496, %v492
    %v498 = vlaneseq
    %v499 = vshrl.u32 %v498, 7
    %v500 = vsub.s32 %v458, %v499
    %v501 = vrot.slane %v289, %v500
    %v502 = vsel %vm463, %v501, %v497
    %v503 = vlaneseq
    %v504 = vshrl.u32 %v503, 7
    %v505 = vsub.s32 %v439, %v504
    %v506 = vrot.slane %v290, %v505
    %v507 = vlaneseq
    %v508 = vshrl.u32 %v507, 7
    %v509 = vsub.s32 %v444, %v508
    %v510 = vrot.slane %v291, %v509
    %v511 = vsel %vm449, %v510, %v506
    %v512 = vlaneseq
    %v513 = vshrl.u32 %v512, 7
    %v514 = vsub.s32 %v451, %v513
    %v515 = vrot.slane %v292, %v514
    %v516 = vsel %vm456, %v515, %v511
    %v517 = vlaneseq
    %v518 = vshrl.u32 %v517, 7
    %v519 = vsub.s32 %v458, %v518
    %v520 = vrot.slane %v293, %v519
    %v521 = vsel %vm463, %v520, %v516
    %v522 = vlaneseq
    %v523 = vshrl.u32 %v522, 7
    %v524 = vsub.s32 %v439, %v523
    %v525 = vrot.slane %v294, %v524
    %v526 = vlaneseq
    %v527 = vshrl.u32 %v526, 7
    %v528 = vsub.s32 %v444, %v527
    %v529 = vrot.slane %v295, %v528
    %v530 = vsel %vm449, %v529, %v525
    %v531 = vlaneseq
    %v532 = vshrl.u32 %v531, 7
    %v533 = vsub.s32 %v451, %v532
    %v534 = vrot.slane %v296, %v533
    %v535 = vsel %vm456, %v534, %v530
    %v536 = vlaneseq
    %v537 = vshrl.u32 %v536, 7
    %v538 = vsub.s32 %v458, %v537
    %v539 = vrot.slane %v297, %v538
    %v540 = vsel %vm463, %v539, %v535
    %v541 = vlaneseq
    %v542 = vshrl.u32 %v541, 7
    %v543 = vsub.s32 %v439, %v542
    %v544 = vrot.slane %v298, %v543
    %v545 = vlaneseq
    %v546 = vshrl.u32 %v545, 7
    %v547 = vsub.s32 %v444, %v546
    %v548 = vrot.slane %v299, %v547
    %v549 = vsel %vm449, %v548, %v544
    %v550 = vlaneseq
    %v551 = vshrl.u32 %v550, 7
    %v552 = vsub.s32 %v451, %v551
    %v553 = vrot.slane %v300, %v552
    %v554 = vsel %vm456, %v553, %v549
    %v555 = vlaneseq
    %v556 = vshrl.u32 %v555, 7
    %v557 = vsub.s32 %v458, %v556
    %v558 = vrot.slane %v301, %v557
    %v559 = vsel %vm463, %v558, %v554
    %v560 = vlaneseq
    %v561 = vshrl.u32 %v560, 7
    %v562 = vsub.s32 %v439, %v561
    %v563 = vrot.slane %v302, %v562
    %v564 = vlaneseq
    %v565 = vshrl.u32 %v564, 7
    %v566 = vsub.s32 %v444, %v565
    %v567 = vrot.slane %v303, %v566
    %v568 = vsel %vm449, %v567, %v563
    %v569 = vlaneseq
    %v570 = vshrl.u32 %v569, 7
    %v571 = vsub.s32 %v451, %v570
    %v572 = vrot.slane %v304, %v571
    %v573 = vsel %vm456, %v572, %v568
    %v574 = vlaneseq
    %v575 = vshrl.u32 %v574, 7
    %v576 = vsub.s32 %v458, %v575
    %v577 = vrot.slane %v305, %v576
    %v578 = vsel %vm463, %v577, %v573
    %v579 = vlaneseq
    %v580 = vshrl.u32 %v579, 7
    %v581 = vsub.s32 %v439, %v580
    %v582 = vrot.slane %v306, %v581
    %v583 = vlaneseq
    %v584 = vshrl.u32 %v583, 7
    %v585 = vsub.s32 %v444, %v584
    %v586 = vrot.slane %v307, %v585
    %v587 = vsel %vm449, %v586, %v582
    %v588 = vlaneseq
    %v589 = vshrl.u32 %v588, 7
    %v590 = vsub.s32 %v451, %v589
    %v591 = vrot.slane %v308, %v590
    %v592 = vsel %vm456, %v591, %v587
    %v593 = vlaneseq
    %v594 = vshrl.u32 %v593, 7
    %v595 = vsub.s32 %v458, %v594
    %v596 = vrot.slane %v309, %v595
    %v597 = vsel %vm463, %v596, %v592
    %vm598 = vcmask 1041409
    %v599 = vsel %vm598, %v483, %v464
    %vm600 = vcmask 1042434
    %v601 = vsel %vm600, %v502, %v599
    %vm602 = vcmask 1043459
    %v603 = vsel %vm602, %v521, %v601
    %vm604 = vcmask 1044484
    %v605 = vsel %vm604, %v540, %v603
    %vm606 = vcmask 1045509
    %v607 = vsel %vm606, %v559, %v605
    %vm608 = vcmask 1046534
    %v609 = vsel %vm608, %v578, %v607
    %vm610 = vcmask 1047559
    %v611 = vsel %vm610, %v597, %v609
    %v644 = vlaneseq
    %v645 = vshrl.u32 %v644, 7
    %v646 = vsub.s32 %v439, %v645
    %v647 = vrot.slane %v312, %v646
    %v648 = vlaneseq
    %v649 = vshrl.u32 %v648, 7
    %v650 = vsub.s32 %v444, %v649
    %v651 = vrot.slane %v315, %v650
    %v652 = vsel %vm449, %v651, %v647
    %v653 = vlaneseq
    %v654 = vshrl.u32 %v653, 7
    %v655 = vsub.s32 %v451, %v654
    %v656 = vrot.slane %v318, %v655
    %v657 = vsel %vm456, %v656, %v652
    %v658 = vlaneseq
    %v659 = vshrl.u32 %v658, 7
    %v660 = vsub.s32 %v458, %v659
    %v661 = vrot.slane %v321, %v660
    %v662 = vsel %vm463, %v661, %v657
    %v663 = vlaneseq
    %v664 = vshrl.u32 %v663, 7
    %v665 = vsub.s32 %v439, %v664
    %v666 = vrot.slane %v324, %v665
    %v667 = vlaneseq
    %v668 = vshrl.u32 %v667, 7
    %v669 = vsub.s32 %v444, %v668
    %v670 = vrot.slane %v327, %v669
    %v671 = vsel %vm449, %v670, %v666
    %v672 = vlaneseq
    %v673 = vshrl.u32 %v672, 7
    %v674 = vsub.s32 %v451, %v673
    %v675 = vrot.slane %v330, %v674
    %v676 = vsel %vm456, %v675, %v671
    %v677 = vlaneseq
    %v678 = vshrl.u32 %v677, 7
    %v679 = vsub.s32 %v458, %v678
    %v680 = vrot.slane %v333, %v679
    %v681 = vsel %vm463, %v680, %v676
    %v682 = vlaneseq
    %v683 = vshrl.u32 %v682, 7
    %v684 = vsub.s32 %v439, %v683
    %v685 = vrot.slane %v336, %v684
    %v686 = vlaneseq
    %v687 = vshrl.u32 %v686, 7
    %v688 = vsub.s32 %v444, %v687
    %v689 = vrot.slane %v339, %v688
    %v690 = vsel %vm449, %v689, %v685
    %v691 = vlaneseq
    %v692 = vshrl.u32 %v691, 7
    %v693 = vsub.s32 %v451, %v692
    %v694 = vrot.slane %v342, %v693
    %v695 = vsel %vm456, %v694, %v690
    %v696 = vlaneseq
    %v697 = vshrl.u32 %v696, 7
    %v698 = vsub.s32 %v458, %v697
    %v699 = vrot.slane %v345, %v698
    %v700 = vsel %vm463, %v699, %v695
    %v701 = vlaneseq
    %v702 = vshrl.u32 %v701, 7
    %v703 = vsub.s32 %v439, %v702
    %v704 = vrot.slane %v348, %v703
    %v705 = vlaneseq
    %v706 = vshrl.u32 %v705, 7
    %v707 = vsub.s32 %v444, %v706
    %v708 = vrot.slane %v351, %v707
    %v709 = vsel %vm449, %v708, %v704
    %v710 = vlaneseq
    %v711 = vshrl.u32 %v710, 7
    %v712 = vsub.s32 %v451, %v711
    %v713 = vrot.slane %v354, %v712
    %v714 = vsel %vm456, %v713, %v709
    %v715 = vlaneseq
    %v716 = vshrl.u32 %v715, 7
    %v717 = vsub.s32 %v458, %v716
    %v718 = vrot.slane %v357, %v717
    %v719 = vsel %vm463, %v718, %v714
    %v720 = vlaneseq
    %v721 = vshrl.u32 %v720, 7
    %v722 = vsub.s32 %v439, %v721
    %v723 = vrot.slane %v360, %v722
    %v724 = vlaneseq
    %v725 = vshrl.u32 %v724, 7
    %v726 = vsub.s32 %v444, %v725
    %v727 = vrot.slane %v363, %v726
    %v728 = vsel %vm449, %v727, %v723
    %v729 = vlaneseq
    %v730 = vshrl.u32 %v729, 7
    %v731 = vsub.s32 %v451, %v730
    %v732 = vrot.slane %v366, %v731
    %v733 = vsel %vm456, %v732, %v728
    %v734 = vlaneseq
    %v735 = vshrl.u32 %v734, 7
    %v736 = vsub.s32 %v458, %v735
    %v737 = vrot.slane %v369, %v736
    %v738 = vsel %vm463, %v737, %v733
    %v739 = vlaneseq
    %v740 = vshrl.u32 %v739, 7
    %v741 = vsub.s32 %v439, %v740
    %v742 = vrot.slane %v372, %v741
    %v743 = vlaneseq
    %v744 = vshrl.u32 %v743, 7
    %v745 = vsub.s32 %v444, %v744
    %v746 = vrot.slane %v375, %v745
    %v747 = vsel %vm449, %v746, %v742
    %v748 = vlaneseq
    %v749 = vshrl.u32 %v748, 7
    %v750 = vsub.s32 %v451, %v749
    %v751 = vrot.slane %v378, %v750
    %v752 = vsel %vm456, %v751, %v747
    %v753 = vlaneseq
    %v754 = vshrl.u32 %v753, 7
    %v755 = vsub.s32 %v458, %v754
    %v756 = vrot.slane %v381, %v755
    %v757 = vsel %vm463, %v756, %v752
    %v758 = vlaneseq
    %v759 = vshrl.u32 %v758, 7
    %v760 = vsub.s32 %v439, %v759
    %v761 = vrot.slane %v384, %v760
    %v762 = vlaneseq
    %v763 = vshrl.u32 %v762, 7
    %v764 = vsub.s32 %v444, %v763
    %v765 = vrot.slane %v387, %v764
    %v766 = vsel %vm449, %v765, %v761
    %v767 = vlaneseq
    %v768 = vshrl.u32 %v767, 7
    %v769 = vsub.s32 %v451, %v768
    %v770 = vrot.slane %v390, %v769
    %v771 = vsel %vm456, %v770, %v766
    %v772 = vlaneseq
    %v773 = vshrl.u32 %v772, 7
    %v774 = vsub.s32 %v458, %v773
    %v775 = vrot.slane %v393, %v774
    %v776 = vsel %vm463, %v775, %v771
    %v777 = vlaneseq
    %v778 = vshrl.u32 %v777, 7
    %v779 = vsub.s32 %v439, %v778
    %v780 = vrot.slane %v396, %v779
    %v781 = vlaneseq
    %v782 = vshrl.u32 %v781, 7
    %v783 = vsub.s32 %v444, %v782
    %v784 = vrot.slane %v399, %v783
    %v785 = vsel %vm449, %v784, %v780
    %v786 = vlaneseq
    %v787 = vshrl.u32 %v786, 7
    %v788 = vsub.s32 %v451, %v787
    %v789 = vrot.slane %v402, %v788
    %v790 = vsel %vm456, %v789, %v785
    %v791 = vlaneseq
    %v792 = vshrl.u32 %v791, 7
    %v793 = vsub.s32 %v458, %v792
    %v794 = vrot.slane %v405, %v793
    %v795 = vsel %vm463, %v794, %v790
    %v796 = vsel %vm598, %v681, %v662
    %v797 = vsel %vm600, %v700, %v796
    %v798 = vsel %vm602, %v719, %v797
    %v799 = vsel %vm604, %v738, %v798
    %v800 = vsel %vm606, %v757, %v799
    %v801 = vsel %vm608, %v776, %v800
    %v802 = vsel %vm610, %v795, %v801
    %v803 = vld [vmem:[#allocation7] sm:$0xff]
    %v804 = vld [vmem:[#allocation7 + $0x8] sm:$0xff]
    %v805 = vld [vmem:[#allocation7 + $0x10] sm:$0xff]
    %v806 = vld [vmem:[#allocation7 + $0x18] sm:$0xff]
    %v807 = vld [vmem:[#allocation10] sm:$0x3]
    %v808 = vld [vmem:[#allocation9] sm:$0x1]
    %v810 = vlaneseq
    %v811 = vshrl.u32 %v810, 7
    %v812 = vsub.s32 0, %v811
    %v813 = vrot.slane %v808, %v812
    %vm815 = vcmask 261120
    %v816 = vsel %vm815, %v611, 0
    %v818 = vsel %vm815, %v802, 0
    %820 = vmatprep.subr.mxu0 0.0
    %821 = vmatpush1.msra.mxu0 %v803
    %822 = vmatprep.subr.mxu0 0.0
    %823 = vmatpush1.msra.mxu0 %v804
    %824 = vmatprep.subr.mxu0 0.0
    %825 = vmatpush1.msra.mxu0 %v805
    %826 = vmatprep.subr.mxu0 0.0
    %827 = vmatpush1.msra.mxu0 %v806
    %828 = vmatprep.subr.mxu0 0.0
    %829 = vmatpush1.msra.mxu0 0.0
    %830 = vmatprep.subr.mxu0 0.0
    %831 = vmatpush1.msra.mxu0 0.0
    %832 = vmatprep.subr.mxu0 0.0
    %833 = vmatpush1.msra.mxu0 0.0
    %834 = vmatprep.subr.mxu0 0.0
    %835 = vmatpush1.msra.mxu0 0.0
    %836 = vmatprep.subr.mxu0 0.0
    %837 = vmatpush1.msra.mxu0 0.0
    %838 = vmatprep.subr.mxu0 0.0
    %839 = vmatpush1.msra.mxu0 0.0
    %840 = vmatprep.subr.mxu0 0.0
    %841 = vmatpush1.msra.mxu0 0.0
    %842 = vmatprep.subr.mxu0 0.0
    %843 = vmatpush1.msra.mxu0 0.0
    %844 = vmatprep.subr.mxu0 0.0
    %845 = vmatpush1.msra.mxu0 0.0
    %846 = vmatprep.subr.mxu0 0.0
    %847 = vmatpush1.msra.mxu0 0.0
    %848 = vmatprep.subr.mxu0 0.0
    %849 = vmatpush1.msra.mxu0 0.0
    %850 = vmatprep.subr.mxu0 0.0
    %851 = vmatpush1.msra.mxu0 0.0
    %852 = vmatprep.subr.mxu0 0.0
    %853 = vmatpush1.msra.mxu0 0.0
    %854 = vmatprep.subr.mxu0 0.0
    %855 = vmatpush1.msra.mxu0 0.0
    %856 = vmatprep.subr.mxu0 0.0
    %857 = vmatpush1.msra.mxu0 0.0
    %858 = vmatprep.subr.mxu0 0.0
    %859 = vmatpush1.msra.mxu0 0.0
    %860 = vmatprep.subr.mxu0 0.0
    %861 = vmatpush1.msra.mxu0 0.0
    %862 = vmatprep.subr.mxu0 0.0
    %863 = vmatpush1.msra.mxu0 0.0
    %864 = vmatprep.subr.mxu0 0.0
    %865 = vmatpush1.msra.mxu0 0.0
    %866 = vmatprep.subr.mxu0 0.0
    %867 = vmatpush1.msra.mxu0 0.0
    %868 = vmatprep.subr.mxu0 0.0
    %869 = vmatpush1.msra.mxu0 0.0
    %870 = vmatprep.subr.mxu0 0.0
    %871 = vmatpush1.msra.mxu0 0.0
    %872 = vmatprep.subr.mxu0 0.0
    %873 = vmatpush1.msra.mxu0 0.0
    %874 = vmatprep.subr.mxu0 0.0
    %875 = vmatpush1.msra.mxu0 0.0
    %876 = vmatprep.subr.mxu0 0.0
    %877 = vmatpush1.msra.mxu0 0.0
    %878 = vmatprep.subr.mxu0 0.0
    %879 = vmatpush1.msra.mxu0 0.0
    %880 = vmatprep.subr.mxu0 0.0
    %881 = vmatpush1.msra.mxu0 0.0
    %882 = vmatprep.subr.mxu0 0.0
    %883 = vmatpush1.msra.mxu0 0.0
    %884 = vmatprep.mubr.f32.mxu0 0.0
    %885 = vmatmul.mubr.f32.gmra.mrb[0].mxu0 %v816
    %v886 = vpop.f32.mrb[0].mxu0
    %v887 = vadd.f32 %v813, %v886
    %v888 = vpop.f32.mrb[0].mxu0
    %889 = vmatprep.mubr.f32.mxu0 0.0
    %890 = vmatmul.mubr.f32.gmra.mrb[0].mxu0 %v818
    %v891 = vpop.f32.mrb[0].mxu0
    %v892 = vadd.f32 %v813, %v891
    %v893 = vpop.f32.mrb[0].mxu0
    %894 = vdwg.mxu0
    %v895 = vmax.f32 %v887, 0.0
    %v896 = vmax.f32 %v892, 0.0
    %v897 = vld [vmem:[#allocation12] sm:$0x1]
    %v899 = vlaneseq
    %v900 = vshrl.u32 %v899, 7
    %v901 = vsub.s32 0, %v900
    %v902 = vrot.slane %v897, %v901
    %vm904 = vcmask 15360
    %v906 = vsel %vm904, %v895, 0
    %v909 = vsel %vm904, %v896, 0
    %vm911 = vcmask 1041408
    %v913 = vsel %vm911, %v807, 0
    %915 = vmatprep.subr.mxu0 0.0
    %916 = vmatpush1.msra.mxu0 %v913
    %917 = vmatprep.subr.mxu0 0.0
    %918 = vmatpush1.msra.mxu0 0.0
    %919 = vmatprep.subr.mxu0 0.0
    %920 = vmatpush1.msra.mxu0 0.0
    %921 = vmatprep.subr.mxu0 0.0
    %922 = vmatpush1.msra.mxu0 0.0
    %923 = vmatprep.subr.mxu0 0.0
    %924 = vmatpush1.msra.mxu0 0.0
    %925 = vmatprep.subr.mxu0 0.0
    %926 = vmatpush1.msra.mxu0 0.0
    %927 = vmatprep.subr.mxu0 0.0
    %928 = vmatpush1.msra.mxu0 0.0
    %929 = vmatprep.subr.mxu0 0.0
    %930 = vmatpush1.msra.mxu0 0.0
    %931 = vmatprep.subr.mxu0 0.0
    %932 = vmatpush1.msra.mxu0 0.0
    %933 = vmatprep.subr.mxu0 0.0
    %934 = vmatpush1.msra.mxu0 0.0
    %935 = vmatprep.subr.mxu0 0.0
    %936 = vmatpush1.msra.mxu0 0.0
    %937 = vmatprep.subr.mxu0 0.0
    %938 = vmatpush1.msra.mxu0 0.0
    %939 = vmatprep.subr.mxu0 0.0
    %940 = vmatpush1.msra.mxu0 0.0
    %941 = vmatprep.subr.mxu0 0.0
    %942 = vmatpush1.msra.mxu0 0.0
    %943 = vmatprep.subr.mxu0 0.0
    %944 = vmatpush1.msra.mxu0 0.0
    %945 = vmatprep.subr.mxu0 0.0
    %946 = vmatpush1.msra.mxu0 0.0
    %947 = vmatprep.subr.mxu0 0.0
    %948 = vmatpush1.msra.mxu0 0.0
    %949 = vmatprep.subr.mxu0 0.0
    %950 = vmatpush1.msra.mxu0 0.0
    %951 = vmatprep.subr.mxu0 0.0
    %952 = vmatpush1.msra.mxu0 0.0
    %953 = vmatprep.subr.mxu0 0.0
    %954 = vmatpush1.msra.mxu0 0.0
    %955 = vmatprep.subr.mxu0 0.0
    %956 = vmatpush1.msra.mxu0 0.0
    %957 = vmatprep.subr.mxu0 0.0
    %958 = vmatpush1.msra.mxu0 0.0
    %959 = vmatprep.subr.mxu0 0.0
    %960 = vmatpush1.msra.mxu0 0.0
    %961 = vmatprep.subr.mxu0 0.0
    %962 = vmatpush1.msra.mxu0 0.0
    %963 = vmatprep.subr.mxu0 0.0
    %964 = vmatpush1.msra.mxu0 0.0
    %965 = vmatprep.subr.mxu0 0.0
    %966 = vmatpush1.msra.mxu0 0.0
    %967 = vmatprep.subr.mxu0 0.0
    %968 = vmatpush1.msra.mxu0 0.0
    %969 = vmatprep.subr.mxu0 0.0
    %970 = vmatpush1.msra.mxu0 0.0
    %971 = vmatprep.subr.mxu0 0.0
    %972 = vmatpush1.msra.mxu0 0.0
    %973 = vmatprep.subr.mxu0 0.0
    %974 = vmatpush1.msra.mxu0 0.0
    %975 = vmatprep.subr.mxu0 0.0
    %976 = vmatpush1.msra.mxu0 0.0
    %977 = vmatprep.subr.mxu0 0.0
    %978 = vmatpush1.msra.mxu0 0.0
    %979 = vmatprep.mubr.f32.mxu0 0.0
    %980 = vmatmul.mubr.f32.gmra.mrb[0].mxu0 %v906
    %v981 = vpop.f32.mrb[0].mxu0
    %v982 = vadd.f32 %v902, %v981
    %v983 = vpop.f32.mrb[0].mxu0
    %984 = vmatprep.mubr.f32.mxu0 0.0
    %985 = vmatmul.mubr.f32.gmra.mrb[0].mxu0 %v909
    %v986 = vpop.f32.mrb[0].mxu0
    %v987 = vadd.f32 %v902, %v986
    %v988 = vpop.f32.mrb[0].mxu0
    %989 = vdwg.mxu0
    %v990 = vadd.f32 %v982, %v987
    %v991 = vxor.u32 %v990, 2147483648
    %v992 = vmul.f32 %v991, 1.442695
    %v993 = vpow.pop %v992
    %v994 = vadd.f32 %v993, 1.0
    %v995 = vrcp.pop %v994
    %v996 = vmul.f32 1.0, %v995
    %v997 = vlaneseq
    %v998 = vshrl.u32 %v997, 7
    %v999 = vsub.s32 0, %v998
    %v1000 = vrot.slane %v996, %v999
    %1002 = vbcast.lane.b32.xlu0 %v1000, 256
    %v1003 = vpop.permute.xlu0 %1002
    %s1005 = sor.u32 256, 8
    %1006 = vbcast.lane.b32.xlu0 %v1000, %s1005
    %v1007 = vpop.permute.xlu0 %1006
    %s1009 = sor.u32 256, 16
    %1010 = vbcast.lane.b32.xlu0 %v1000, %s1009
    %v1011 = vpop.permute.xlu0 %1010
    %s1013 = sor.u32 256, 24
    %1014 = vbcast.lane.b32.xlu0 %v1000, %s1013
    %v1015 = vpop.permute.xlu0 %1014
    %v1016 = vlaneseq
    %v1017 = vshrl.u32 %v1016, 7
    %v1018 = vsub.s32 1, %v1017
    %v1019 = vrot.slane %v996, %v1018
    %1021 = vbcast.lane.b32.xlu0 %v1019, 256
    %v1022 = vpop.permute.xlu0 %1021
    %s1024 = sor.u32 256, 8
    %1025 = vbcast.lane.b32.xlu0 %v1019, %s1024
    %v1026 = vpop.permute.xlu0 %1025
    %s1028 = sor.u32 256, 16
    %1029 = vbcast.lane.b32.xlu0 %v1019, %s1028
    %v1030 = vpop.permute.xlu0 %1029
    %s1032 = sor.u32 256, 24
    %1033 = vbcast.lane.b32.xlu0 %v1019, %s1032
    %v1034 = vpop.permute.xlu0 %1033
    %v1035 = vlaneseq
    %v1036 = vshrl.u32 %v1035, 7
    %v1037 = vsub.s32 2, %v1036
    %v1038 = vrot.slane %v996, %v1037
    %1040 = vbcast.lane.b32.xlu0 %v1038, 256
    %v1041 = vpop.permute.xlu0 %1040
    %s1043 = sor.u32 256, 8
    %1044 = vbcast.lane.b32.xlu0 %v1038, %s1043
    %v1045 = vpop.permute.xlu0 %1044
    %s1047 = sor.u32 256, 16
    %1048 = vbcast.lane.b32.xlu0 %v1038, %s1047
    %v1049 = vpop.permute.xlu0 %1048
    %s1051 = sor.u32 256, 24
    %1052 = vbcast.lane.b32.xlu0 %v1038, %s1051
    %v1053 = vpop.permute.xlu0 %1052
    %v1054 = vlaneseq
    %v1055 = vshrl.u32 %v1054, 7
    %v1056 = vsub.s32 3, %v1055
    %v1057 = vrot.slane %v996, %v1056
    %1059 = vbcast.lane.b32.xlu0 %v1057, 256
    %v1060 = vpop.permute.xlu0 %1059
    %s1062 = sor.u32 256, 8
    %1063 = vbcast.lane.b32.xlu0 %v1057, %s1062
    %v1064 = vpop.permute.xlu0 %1063
    %s1066 = sor.u32 256, 16
    %1067 = vbcast.lane.b32.xlu0 %v1057, %s1066
    %v1068 = vpop.permute.xlu0 %1067
    %s1070 = sor.u32 256, 24
    %1071 = vbcast.lane.b32.xlu0 %v1057, %s1070
    %v1072 = vpop.permute.xlu0 %1071
    %v1073 = vlaneseq
    %v1074 = vshrl.u32 %v1073, 7
    %v1075 = vsub.s32 4, %v1074
    %v1076 = vrot.slane %v996, %v1075
    %1078 = vbcast.lane.b32.xlu0 %v1076, 256
    %v1079 = vpop.permute.xlu0 %1078
    %s1081 = sor.u32 256, 8
    %1082 = vbcast.lane.b32.xlu0 %v1076, %s1081
    %v1083 = vpop.permute.xlu0 %1082
    %s1085 = sor.u32 256, 16
    %1086 = vbcast.lane.b32.xlu0 %v1076, %s1085
    %v1087 = vpop.permute.xlu0 %1086
    %s1089 = sor.u32 256, 24
    %1090 = vbcast.lane.b32.xlu0 %v1076, %s1089
    %v1091 = vpop.permute.xlu0 %1090
    %v1092 = vlaneseq
    %v1093 = vshrl.u32 %v1092, 7
    %v1094 = vsub.s32 5, %v1093
    %v1095 = vrot.slane %v996, %v1094
    %1097 = vbcast.lane.b32.xlu0 %v1095, 256
    %v1098 = vpop.permute.xlu0 %1097
    %s1100 = sor.u32 256, 8
    %1101 = vbcast.lane.b32.xlu0 %v1095, %s1100
    %v1102 = vpop.permute.xlu0 %1101
    %s1104 = sor.u32 256, 16
    %1105 = vbcast.lane.b32.xlu0 %v1095, %s1104
    %v1106 = vpop.permute.xlu0 %1105
    %s1108 = sor.u32 256, 24
    %1109 = vbcast.lane.b32.xlu0 %v1095, %s1108
    %v1110 = vpop.permute.xlu0 %1109
    %v1111 = vlaneseq
    %v1112 = vshrl.u32 %v1111, 7
    %v1113 = vsub.s32 6, %v1112
    %v1114 = vrot.slane %v996, %v1113
    %1116 = vbcast.lane.b32.xlu0 %v1114, 256
    %v1117 = vpop.permute.xlu0 %1116
    %s1119 = sor.u32 256, 8
    %1120 = vbcast.lane.b32.xlu0 %v1114, %s1119
    %v1121 = vpop.permute.xlu0 %1120
    %s1123 = sor.u32 256, 16
    %1124 = vbcast.lane.b32.xlu0 %v1114, %s1123
    %v1125 = vpop.permute.xlu0 %1124
    %s1127 = sor.u32 256, 24
    %1128 = vbcast.lane.b32.xlu0 %v1114, %s1127
    %v1129 = vpop.permute.xlu0 %1128
    %v1130 = vlaneseq
    %v1131 = vshrl.u32 %v1130, 7
    %v1132 = vsub.s32 7, %v1131
    %v1133 = vrot.slane %v996, %v1132
    %1135 = vbcast.lane.b32.xlu0 %v1133, 256
    %v1136 = vpop.permute.xlu0 %1135
    %s1138 = sor.u32 256, 8
    %1139 = vbcast.lane.b32.xlu0 %v1133, %s1138
    %v1140 = vpop.permute.xlu0 %1139
    %s1142 = sor.u32 256, 16
    %1143 = vbcast.lane.b32.xlu0 %v1133, %s1142
    %v1144 = vpop.permute.xlu0 %1143
    %s1146 = sor.u32 256, 24
    %1147 = vbcast.lane.b32.xlu0 %v1133, %s1146
    %v1148 = vpop.permute.xlu0 %1147
    %v1149 = vmul.f32 %v118, %v1003
    %v1150 = vmul.f32 %v119, %v1003
    %v1151 = vmul.f32 %v120, %v1007
    %v1152 = vmul.f32 %v121, %v1007
    %v1153 = vmul.f32 %v122, %v1011
    %v1154 = vmul.f32 %v123, %v1011
    %v1155 = vmul.f32 %v124, %v1015
    %v1156 = vmul.f32 %v125, %v1015
    %v1157 = vmul.f32 %v126, %v1022
    %v1158 = vmul.f32 %v127, %v1022
    %v1159 = vmul.f32 %v128, %v1026
    %v1160 = vmul.f32 %v129, %v1026
    %v1161 = vmul.f32 %v130, %v1030
    %v1162 = vmul.f32 %v131, %v1030
    %v1163 = vmul.f32 %v132, %v1034
    %v1164 = vmul.f32 %v133, %v1034
    %v1165 = vmul.f32 %v134, %v1041
    %v1166 = vmul.f32 %v135, %v1041
    %v1167 = vmul.f32 %v136, %v1045
    %v1168 = vmul.f32 %v137, %v1045
    %v1169 = vmul.f32 %v138, %v1049
    %v1170 = vmul.f32 %v139, %v1049
    %v1171 = vmul.f32 %v140, %v1053
    %v1172 = vmul.f32 %v141, %v1053
    %v1173 = vmul.f32 %v142, %v1060
    %v1174 = vmul.f32 %v143, %v1060
    %v1175 = vmul.f32 %v144, %v1064
    %v1176 = vmul.f32 %v145, %v1064
    %v1177 = vmul.f32 %v146, %v1068
    %v1178 = vmul.f32 %v147, %v1068
    %v1179 = vmul.f32 %v148, %v1072
    %v1180 = vmul.f32 %v149, %v1072
    %v1181 = vmul.f32 %v150, %v1079
    %v1182 = vmul.f32 %v151, %v1079
    %v1183 = vmul.f32 %v152, %v1083
    %v1184 = vmul.f32 %v153, %v1083
    %v1185 = vmul.f32 %v154, %v1087
    %v1186 = vmul.f32 %v155, %v1087
    %v1187 = vmul.f32 %v156, %v1091
    %v1188 = vmul.f32 %v157, %v1091
    %v1189 = vmul.f32 %v158, %v1098
    %v1190 = vmul.f32 %v159, %v1098
    %v1191 = vmul.f32 %v160, %v1102
    %v1192 = vmul.f32 %v161, %v1102
    %v1193 = vmul.f32 %v162, %v1106
    %v1194 = vmul.f32 %v163, %v1106
    %v1195 = vmul.f32 %v164, %v1110
    %v1196 = vmul.f32 %v165, %v1110
    %v1197 = vmul.f32 %v166, %v1117
    %v1198 = vmul.f32 %v167, %v1117
    %v1199 = vmul.f32 %v168, %v1121
    %v1200 = vmul.f32 %v169, %v1121
    %v1201 = vmul.f32 %v170, %v1125
    %v1202 = vmul.f32 %v171, %v1125
    %v1203 = vmul.f32 %v172, %v1129
    %v1204 = vmul.f32 %v173, %v1129
    %v1205 = vmul.f32 %v174, %v1136
    %v1206 = vmul.f32 %v175, %v1136
    %v1207 = vmul.f32 %v176, %v1140
    %v1208 = vmul.f32 %v177, %v1140
    %v1209 = vmul.f32 %v178, %v1144
    %v1210 = vmul.f32 %v179, %v1144
    %v1211 = vmul.f32 %v180, %v1148
    %v1212 = vmul.f32 %v181, %v1148
    %v1213 = vadd.f32 %v1149, %v1151
    %v1214 = vadd.f32 %v1213, %v1153
    %v1215 = vadd.f32 %v1214, %v1155
    %v1216 = vrot.slane %v1215, 4
    %v1217 = vadd.f32 %v1215, %v1216
    %v1218 = vrot.slane %v1217, 2
    %v1219 = vadd.f32 %v1217, %v1218
    %v1220 = vrot.slane %v1219, 1
    %v1221 = vadd.f32 %v1219, %v1220
    %v1222 = vadd.f32 %v1150, %v1152
    %v1223 = vadd.f32 %v1222, %v1154
    %v1224 = vadd.f32 %v1223, %v1156
    %v1225 = vrot.slane %v1224, 4
    %v1226 = vadd.f32 %v1224, %v1225
    %v1227 = vrot.slane %v1226, 2
    %v1228 = vadd.f32 %v1226, %v1227
    %v1229 = vrot.slane %v1228, 1
    %v1230 = vadd.f32 %v1228, %v1229
    %v1231 = vadd.f32 %v1157, %v1159
    %v1232 = vadd.f32 %v1231, %v1161
    %v1233 = vadd.f32 %v1232, %v1163
    %v1234 = vrot.slane %v1233, 4
    %v1235 = vadd.f32 %v1233, %v1234
    %v1236 = vrot.slane %v1235, 2
    %v1237 = vadd.f32 %v1235, %v1236
    %v1238 = vrot.slane %v1237, 1
    %v1239 = vadd.f32 %v1237, %v1238
    %v1240 = vadd.f32 %v1158, %v1160
    %v1241 = vadd.f32 %v1240, %v1162
    %v1242 = vadd.f32 %v1241, %v1164
    %v1243 = vrot.slane %v1242, 4
    %v1244 = vadd.f32 %v1242, %v1243
    %v1245 = vrot.slane %v1244, 2
    %v1246 = vadd.f32 %v1244, %v1245
    %v1247 = vrot.slane %v1246, 1
    %v1248 = vadd.f32 %v1246, %v1247
    %v1249 = vadd.f32 %v1165, %v1167
    %v1250 = vadd.f32 %v1249, %v1169
    %v1251 = vadd.f32 %v1250, %v1171
    %v1252 = vrot.slane %v1251, 4
    %v1253 = vadd.f32 %v1251, %v1252
    %v1254 = vrot.slane %v1253, 2
    %v1255 = vadd.f32 %v1253, %v1254
    %v1256 = vrot.slane %v1255, 1
    %v1257 = vadd.f32 %v1255, %v1256
    %v1258 = vadd.f32 %v1166, %v1168
    %v1259 = vadd.f32 %v1258, %v1170
    %v1260 = vadd.f32 %v1259, %v1172
    %v1261 = vrot.slane %v1260, 4
    %v1262 = vadd.f32 %v1260, %v1261
    %v1263 = vrot.slane %v1262, 2
    %v1264 = vadd.f32 %v1262, %v1263
    %v1265 = vrot.slane %v1264, 1
    %v1266 = vadd.f32 %v1264, %v1265
    %v1267 = vadd.f32 %v1173, %v1175
    %v1268 = vadd.f32 %v1267, %v1177
    %v1269 = vadd.f32 %v1268, %v1179
    %v1270 = vrot.slane %v1269, 4
    %v1271 = vadd.f32 %v1269, %v1270
    %v1272 = vrot.slane %v1271, 2
    %v1273 = vadd.f32 %v1271, %v1272
    %v1274 = vrot.slane %v1273, 1
    %v1275 = vadd.f32 %v1273, %v1274
    %v1276 = vadd.f32 %v1174, %v1176
    %v1277 = vadd.f32 %v1276, %v1178
    %v1278 = vadd.f32 %v1277, %v1180
    %v1279 = vrot.slane %v1278, 4
    %v1280 = vadd.f32 %v1278, %v1279
    %v1281 = vrot.slane %v1280, 2
    %v1282 = vadd.f32 %v1280, %v1281
    %v1283 = vrot.slane %v1282, 1
    %v1284 = vadd.f32 %v1282, %v1283
    %v1285 = vadd.f32 %v1181, %v1183
    %v1286 = vadd.f32 %v1285, %v1185
    %v1287 = vadd.f32 %v1286, %v1187
    %v1288 = vrot.slane %v1287, 4
    %v1289 = vadd.f32 %v1287, %v1288
    %v1290 = vrot.slane %v1289, 2
    %v1291 = vadd.f32 %v1289, %v1290
    %v1292 = vrot.slane %v1291, 1
    %v1293 = vadd.f32 %v1291, %v1292
    %v1294 = vadd.f32 %v1182, %v1184
    %v1295 = vadd.f32 %v1294, %v1186
    %v1296 = vadd.f32 %v1295, %v1188
    %v1297 = vrot.slane %v1296, 4
    %v1298 = vadd.f32 %v1296, %v1297
    %v1299 = vrot.slane %v1298, 2
    %v1300 = vadd.f32 %v1298, %v1299
    %v1301 = vrot.slane %v1300, 1
    %v1302 = vadd.f32 %v1300, %v1301
    %v1303 = vadd.f32 %v1189, %v1191
    %v1304 = vadd.f32 %v1303, %v1193
    %v1305 = vadd.f32 %v1304, %v1195
    %v1306 = vrot.slane %v1305, 4
    %v1307 = vadd.f32 %v1305, %v1306
    %v1308 = vrot.slane %v1307, 2
    %v1309 = vadd.f32 %v1307, %v1308
    %v1310 = vrot.slane %v1309, 1
    %v1311 = vadd.f32 %v1309, %v1310
    %v1312 = vadd.f32 %v1190, %v1192
    %v1313 = vadd.f32 %v1312, %v1194
    %v1314 = vadd.f32 %v1313, %v1196
    %v1315 = vrot.slane %v1314, 4
    %v1316 = vadd.f32 %v1314, %v1315
    %v1317 = vrot.slane %v1316, 2
    %v1318 = vadd.f32 %v1316, %v1317
    %v1319 = vrot.slane %v1318, 1
    %v1320 = vadd.f32 %v1318, %v1319
    %v1321 = vadd.f32 %v1197, %v1199
    %v1322 = vadd.f32 %v1321, %v1201
    %v1323 = vadd.f32 %v1322, %v1203
    %v1324 = vrot.slane %v1323, 4
    %v1325 = vadd.f32 %v1323, %v1324
    %v1326 = vrot.slane %v1325, 2
    %v1327 = vadd.f32 %v1325, %v1326
    %v1328 = vrot.slane %v1327, 1
    %v1329 = vadd.f32 %v1327, %v1328
    %v1330 = vadd.f32 %v1198, %v1200
    %v1331 = vadd.f32 %v1330, %v1202
    %v1332 = vadd.f32 %v1331, %v1204
    %v1333 = vrot.slane %v1332, 4
    %v1334 = vadd.f32 %v1332, %v1333
    %v1335 = vrot.slane %v1334, 2
    %v1336 = vadd.f32 %v1334, %v1335
    %v1337 = vrot.slane %v1336, 1
    %v1338 = vadd.f32 %v1336, %v1337
    %v1339 = vadd.f32 %v1205, %v1207
    %v1340 = vadd.f32 %v1339, %v1209
    %v1341 = vadd.f32 %v1340, %v1211
    %v1342 = vrot.slane %v1341, 4
    %v1343 = vadd.f32 %v1341, %v1342
    %v1344 = vrot.slane %v1343, 2
    %v1345 = vadd.f32 %v1343, %v1344
    %v1346 = vrot.slane %v1345, 1
    %v1347 = vadd.f32 %v1345, %v1346
    %v1348 = vadd.f32 %v1206, %v1208
    %v1349 = vadd.f32 %v1348, %v1210
    %v1350 = vadd.f32 %v1349, %v1212
    %v1351 = vrot.slane %v1350, 4
    %v1352 = vadd.f32 %v1350, %v1351
    %v1353 = vrot.slane %v1352, 2
    %v1354 = vadd.f32 %v1352, %v1353
    %v1355 = vrot.slane %v1354, 1
    %v1356 = vadd.f32 %v1354, %v1355
    %v1357 = vmul.f32 %v1221, 0.03125
    %v1358 = vmul.f32 %v1230, 0.03125
    %v1359 = vmul.f32 %v1239, 0.03125
    %v1360 = vmul.f32 %v1248, 0.03125
    %v1361 = vmul.f32 %v1257, 0.03125
    %v1362 = vmul.f32 %v1266, 0.03125
    %v1363 = vmul.f32 %v1275, 0.03125
    %v1364 = vmul.f32 %v1284, 0.03125
    %v1365 = vmul.f32 %v1293, 0.03125
    %v1366 = vmul.f32 %v1302, 0.03125
    %v1367 = vmul.f32 %v1311, 0.03125
    %v1368 = vmul.f32 %v1320, 0.03125
    %v1369 = vmul.f32 %v1329, 0.03125
    %v1370 = vmul.f32 %v1338, 0.03125
    %v1371 = vmul.f32 %v1347, 0.03125
    %v1372 = vmul.f32 %v1356, 0.03125
    %v1373 = vmax.f32 %v1149, %v1151
    %v1374 = vmax.f32 %v1373, %v1153
    %v1375 = vmax.f32 %v1374, %v1155
    %v1376 = vrot.slane %v1375, 4
    %v1377 = vmax.f32 %v1375, %v1376
    %v1378 = vrot.slane %v1377, 2
    %v1379 = vmax.f32 %v1377, %v1378
    %v1380 = vrot.slane %v1379, 1
    %v1381 = vmax.f32 %v1379, %v1380
    %v1382 = vmax.f32 %v1150, %v1152
    %v1383 = vmax.f32 %v1382, %v1154
    %v1384 = vmax.f32 %v1383, %v1156
    %v1385 = vrot.slane %v1384, 4
    %v1386 = vmax.f32 %v1384, %v1385
    %v1387 = vrot.slane %v1386, 2
    %v1388 = vmax.f32 %v1386, %v1387
    %v1389 = vrot.slane %v1388, 1
    %v1390 = vmax.f32 %v1388, %v1389
    %v1391 = vmax.f32 %v1157, %v1159
    %v1392 = vmax.f32 %v1391, %v1161
    %v1393 = vmax.f32 %v1392, %v1163
    %v1394 = vrot.slane %v1393, 4
    %v1395 = vmax.f32 %v1393, %v1394
    %v1396 = vrot.slane %v1395, 2
    %v1397 = vmax.f32 %v1395, %v1396
    %v1398 = vrot.slane %v1397, 1
    %v1399 = vmax.f32 %v1397, %v1398
    %v1400 = vmax.f32 %v1158, %v1160
    %v1401 = vmax.f32 %v1400, %v1162
    %v1402 = vmax.f32 %v1401, %v1164
    %v1403 = vrot.slane %v1402, 4
    %v1404 = vmax.f32 %v1402, %v1403
    %v1405 = vrot.slane %v1404, 2
    %v1406 = vmax.f32 %v1404, %v1405
    %v1407 = vrot.slane %v1406, 1
    %v1408 = vmax.f32 %v1406, %v1407
    %v1409 = vmax.f32 %v1165, %v1167
    %v1410 = vmax.f32 %v1409, %v1169
    %v1411 = vmax.f32 %v1410, %v1171
    %v1412 = vrot.slane %v1411, 4
    %v1413 = vmax.f32 %v1411, %v1412
    %v1414 = vrot.slane %v1413, 2
    %v1415 = vmax.f32 %v1413, %v1414
    %v1416 = vrot.slane %v1415, 1
    %v1417 = vmax.f32 %v1415, %v1416
    %v1418 = vmax.f32 %v1166, %v1168
    %v1419 = vmax.f32 %v1418, %v1170
    %v1420 = vmax.f32 %v1419, %v1172
    %v1421 = vrot.slane %v1420, 4
    %v1422 = vmax.f32 %v1420, %v1421
    %v1423 = vrot.slane %v1422, 2
    %v1424 = vmax.f32 %v1422, %v1423
    %v1425 = vrot.slane %v1424, 1
    %v1426 = vmax.f32 %v1424, %v1425
    %v1427 = vmax.f32 %v1173, %v1175
    %v1428 = vmax.f32 %v1427, %v1177
    %v1429 = vmax.f32 %v1428, %v1179
    %v1430 = vrot.slane %v1429, 4
    %v1431 = vmax.f32 %v1429, %v1430
    %v1432 = vrot.slane %v1431, 2
    %v1433 = vmax.f32 %v1431, %v1432
    %v1434 = vrot.slane %v1433, 1
    %v1435 = vmax.f32 %v1433, %v1434
    %v1436 = vmax.f32 %v1174, %v1176
    %v1437 = vmax.f32 %v1436, %v1178
    %v1438 = vmax.f32 %v1437, %v1180
    %v1439 = vrot.slane %v1438, 4
    %v1440 = vmax.f32 %v1438, %v1439
    %v1441 = vrot.slane %v1440, 2
    %v1442 = vmax.f32 %v1440, %v1441
    %v1443 = vrot.slane %v1442, 1
    %v1444 = vmax.f32 %v1442, %v1443
    %v1445 = vmax.f32 %v1181, %v1183
    %v1446 = vmax.f32 %v1445, %v1185
    %v1447 = vmax.f32 %v1446, %v1187
    %v1448 = vrot.slane %v1447, 4
    %v1449 = vmax.f32 %v1447, %v1448
    %v1450 = vrot.slane %v1449, 2
    %v1451 = vmax.f32 %v1449, %v1450
    %v1452 = vrot.slane %v1451, 1
    %v1453 = vmax.f32 %v1451, %v1452
    %v1454 = vmax.f32 %v1182, %v1184
    %v1455 = vmax.f32 %v1454, %v1186
    %v1456 = vmax.f32 %v1455, %v1188
    %v1457 = vrot.slane %v1456, 4
    %v1458 = vmax.f32 %v1456, %v1457
    %v1459 = vrot.slane %v1458, 2
    %v1460 = vmax.f32 %v1458, %v1459
    %v1461 = vrot.slane %v1460, 1
    %v1462 = vmax.f32 %v1460, %v1461
    %v1463 = vmax.f32 %v1189, %v1191
    %v1464 = vmax.f32 %v1463, %v1193
    %v1465 = vmax.f32 %v1464, %v1195
    %v1466 = vrot.slane %v1465, 4
    %v1467 = vmax.f32 %v1465, %v1466
    %v1468 = vrot.slane %v1467, 2
    %v1469 = vmax.f32 %v1467, %v1468
    %v1470 = vrot.slane %v1469, 1
    %v1471 = vmax.f32 %v1469, %v1470
    %v1472 = vmax.f32 %v1190, %v1192
    %v1473 = vmax.f32 %v1472, %v1194
    %v1474 = vmax.f32 %v1473, %v1196
    %v1475 = vrot.slane %v1474, 4
    %v1476 = vmax.f32 %v1474, %v1475
    %v1477 = vrot.slane %v1476, 2
    %v1478 = vmax.f32 %v1476, %v1477
    %v1479 = vrot.slane %v1478, 1
    %v1480 = vmax.f32 %v1478, %v1479
    %v1481 = vmax.f32 %v1197, %v1199
    %v1482 = vmax.f32 %v1481, %v1201
    %v1483 = vmax.f32 %v1482, %v1203
    %v1484 = vrot.slane %v1483, 4
    %v1485 = vmax.f32 %v1483, %v1484
    %v1486 = vrot.slane %v1485, 2
    %v1487 = vmax.f32 %v1485, %v1486
    %v1488 = vrot.slane %v1487, 1
    %v1489 = vmax.f32 %v1487, %v1488
    %v1490 = vmax.f32 %v1198, %v1200
    %v1491 = vmax.f32 %v1490, %v1202
    %v1492 = vmax.f32 %v1491, %v1204
    %v1493 = vrot.slane %v1492, 4
    %v1494 = vmax.f32 %v1492, %v1493
    %v1495 = vrot.slane %v1494, 2
    %v1496 = vmax.f32 %v1494, %v1495
    %v1497 = vrot.slane %v1496, 1
    %v1498 = vmax.f32 %v1496, %v1497
    %v1499 = vmax.f32 %v1205, %v1207
    %v1500 = vmax.f32 %v1499, %v1209
    %v1501 = vmax.f32 %v1500, %v1211
    %v1502 = vrot.slane %v1501, 4
    %v1503 = vmax.f32 %v1501, %v1502
    %v1504 = vrot.slane %v1503, 2
    %v1505 = vmax.f32 %v1503, %v1504
    %v1506 = vrot.slane %v1505, 1
    %v1507 = vmax.f32 %v1505, %v1506
    %v1508 = vmax.f32 %v1206, %v1208
    %v1509 = vmax.f32 %v1508, %v1210
    %v1510 = vmax.f32 %v1509, %v1212
    %v1511 = vrot.slane %v1510, 4
    %v1512 = vmax.f32 %v1510, %v1511
    %v1513 = vrot.slane %v1512, 2
    %v1514 = vmax.f32 %v1512, %v1513
    %v1515 = vrot.slane %v1514, 1
    %v1516 = vmax.f32 %v1514, %v1515
    %v1533 = vsel %vm598, %v1359, %v1357
    %v1534 = vsel %vm600, %v1361, %v1533
    %v1535 = vsel %vm602, %v1363, %v1534
    %v1536 = vsel %vm604, %v1365, %v1535
    %v1537 = vsel %vm606, %v1367, %v1536
    %v1538 = vsel %vm608, %v1369, %v1537
    %v1539 = vsel %vm610, %v1371, %v1538
    %v1540 = vsel %vm598, %v1360, %v1358
    %v1541 = vsel %vm600, %v1362, %v1540
    %v1542 = vsel %vm602, %v1364, %v1541
    %v1543 = vsel %vm604, %v1366, %v1542
    %v1544 = vsel %vm606, %v1368, %v1543
    %v1545 = vsel %vm608, %v1370, %v1544
    %v1546 = vsel %vm610, %v1372, %v1545
    %v1565 = vsel %vm598, %v1399, %v1381
    %v1566 = vsel %vm600, %v1417, %v1565
    %v1567 = vsel %vm602, %v1435, %v1566
    %v1568 = vsel %vm604, %v1453, %v1567
    %v1569 = vsel %vm606, %v1471, %v1568
    %v1570 = vsel %vm608, %v1489, %v1569
    %v1571 = vsel %vm610, %v1507, %v1570
    %v1572 = vsel %vm598, %v1408, %v1390
    %v1573 = vsel %vm600, %v1426, %v1572
    %v1574 = vsel %vm602, %v1444, %v1573
    %v1575 = vsel %vm604, %v1462, %v1574
    %v1576 = vsel %vm606, %v1480, %v1575
    %v1577 = vsel %vm608, %v1498, %v1576
    %v1578 = vsel %vm610, %v1516, %v1577
    %v1581 = vlaneseq
    %v1582 = vshrl.u32 %v1581, 7
    %v1583 = vadd.s32 %v1582, 8
    %vm1584 = vcmp.lt.s32.totalorder %v1582, 8
    %vm1585 = vcmp.lt.s32.totalorder %v1583, 8
    %1586 = vrot.lane.b32.xlu0 %v1539, 17
    %v1587 = vpop.permute.xlu0 %1586
    %1588 = vrot.lane.b32.xlu0 %v1571, 17
    %v1589 = vpop.permute.xlu0 %1588
    %1590 = vrot.lane.b32.xlu0 %v1546, 17
    %v1591 = vpop.permute.xlu0 %1590
    %1592 = vrot.lane.b32.xlu0 %v1578, 17
    %v1593 = vpop.permute.xlu0 %1592
    %vm1594 = vcmp.lt.s32.totalorder %v439, 17
    %v1595 = vsel %vm1594, %v1587, %v1591
    %v1596 = vsel %vm1594, %v1589, %v1593
    %v1597 = vsel %vm1594, %v1591, %v1587
    %v1598 = vsel %vm1594, %v1593, %v1589
    %s1599 = sld [smem:[#allocation13]]
    %s1600 = sld [smem:[#allocation13 + $0x9]]
    %v1601 = vstv %s1599
    %v1602 = vstv %s1600
    %v1603 = vsel %vm1584, %v1601, %v1602
    %v1604 = vsel %vm1585, %v1601, %v1602
    %v1605 = vld [vmem:[#allocation14] ss:$8 sm:$0x3]
    %v1606 = vmul.f32 %v1603, %v1597
    %v1607 = vmul.f32 %v1603, %v1595
    %v1608 = vmul.f32 %v1604, %v1598
    %v1609 = vmul.f32 %v1604, %v1596
    %v1611 = vlaneseq
    %v1612 = vshrl.u32 %v1611, 7
    %v1613 = vsub.s32 0, %v1612
    %v1614 = vrot.slane %v1605, %v1613
    %v1615 = vlaneseq
    %v1616 = vshrl.u32 %v1615, 7
    %v1617 = vsub.s32 1, %v1616
    %v1618 = vrot.slane %v1605, %v1617
    %v1621 = vmul.f32 %v1614, %v1606
    %v1622 = vmul.f32 %v1618, %v1607
    %v1623 = vmul.f32 %v1614, %v1608
    %v1624 = vmul.f32 %v1618, %v1609
    %v1625 = vadd.f32 %v1621, 0.0
    %v1626 = vadd.f32 %v1622, 0.0
    %v1627 = vadd.f32 %v1623, 0.0
    %v1628 = vadd.f32 %v1624, 0.0
    %1629 = vrot.lane.b32.xlu0 %v1539, 16
    %v1630 = vpop.permute.xlu0 %1629
    %1631 = vrot.lane.b32.xlu0 %v1571, 16
    %v1632 = vpop.permute.xlu0 %1631
    %1633 = vrot.lane.b32.xlu0 %v1546, 16
    %v1634 = vpop.permute.xlu0 %1633
    %1635 = vrot.lane.b32.xlu0 %v1578, 16
    %v1636 = vpop.permute.xlu0 %1635
    %vm1637 = vcmp.lt.s32.totalorder %v439, 16
    %v1638 = vsel %vm1637, %v1630, %v1634
    %v1639 = vsel %vm1637, %v1632, %v1636
    %v1640 = vsel %vm1637, %v1634, %v1630
    %v1641 = vsel %vm1637, %v1636, %v1632
    %s1642 = sld [smem:[#allocation13 + $0x1]]
    %s1643 = sld [smem:[#allocation13 + $0xa]]
    %v1644 = vstv %s1642
    %v1645 = vstv %s1643
    %v1646 = vsel %vm1584, %v1644, %v1645
    %v1647 = vsel %vm1585, %v1644, %v1645
    %s1648 = scalar_lea.vmem [#allocation14], 1
    %v1649 = vld [vmem:[%s1648] ss:$8 sm:$0x3]
    %v1650 = vmul.f32 %v1646, %v1640
    %v1651 = vmul.f32 %v1646, %v1638
    %v1652 = vmul.f32 %v1647, %v1641
    %v1653 = vmul.f32 %v1647, %v1639
    %v1655 = vlaneseq
    %v1656 = vshrl.u32 %v1655, 7
    %v1657 = vsub.s32 0, %v1656
    %v1658 = vrot.slane %v1649, %v1657
    %v1659 = vlaneseq
    %v1660 = vshrl.u32 %v1659, 7
    %v1661 = vsub.s32 1, %v1660
    %v1662 = vrot.slane %v1649, %v1661
    %v1665 = vmul.f32 %v1658, %v1650
    %v1666 = vmul.f32 %v1662, %v1651
    %v1667 = vmul.f32 %v1658, %v1652
    %v1668 = vmul.f32 %v1662, %v1653
    %v1669 = vadd.f32 %v1625, %v1665
    %v1670 = vadd.f32 %v1626, %v1666
    %v1671 = vadd.f32 %v1627, %v1667
    %v1672 = vadd.f32 %v1628, %v1668
    %1673 = vrot.lane.b32.xlu0 %v1539, 15
    %v1674 = vpop.permute.xlu0 %1673
    %1675 = vrot.lane.b32.xlu0 %v1571, 15
    %v1676 = vpop.permute.xlu0 %1675
    %1677 = vrot.lane.b32.xlu0 %v1546, 15
    %v1678 = vpop.permute.xlu0 %1677
    %1679 = vrot.lane.b32.xlu0 %v1578, 15
    %v1680 = vpop.permute.xlu0 %1679
    %vm1681 = vcmp.lt.s32.totalorder %v439, 15
    %v1682 = vsel %vm1681, %v1674, %v1678
    %v1683 = vsel %vm1681, %v1676, %v1680
    %v1684 = vsel %vm1681, %v1678, %v1674
    %v1685 = vsel %vm1681, %v1680, %v1676
    %s1686 = sld [smem:[#allocation13 + $0x2]]
    %s1687 = sld [smem:[#allocation13 + $0xb]]
    %v1688 = vstv %s1686
    %v1689 = vstv %s1687
    %v1690 = vsel %vm1584, %v1688, %v1689
    %v1691 = vsel %vm1585, %v1688, %v1689
    %s1692 = scalar_lea.vmem [#allocation14], 2
    %v1693 = vld [vmem:[%s1692] ss:$8 sm:$0x3]
    %v1694 = vmul.f32 %v1690, %v1684
    %v1695 = vmul.f32 %v1690, %v1682
    %v1696 = vmul.f32 %v1691, %v1685
    %v1697 = vmul.f32 %v1691, %v1683
    %v1699 = vlaneseq
    %v1700 = vshrl.u32 %v1699, 7
    %v1701 = vsub.s32 0, %v1700
    %v1702 = vrot.slane %v1693, %v1701
    %v1703 = vlaneseq
    %v1704 = vshrl.u32 %v1703, 7
    %v1705 = vsub.s32 1, %v1704
    %v1706 = vrot.slane %v1693, %v1705
    %v1709 = vmul.f32 %v1702, %v1694
    %v1710 = vmul.f32 %v1706, %v1695
    %v1711 = vmul.f32 %v1702, %v1696
    %v1712 = vmul.f32 %v1706, %v1697
    %v1713 = vadd.f32 %v1669, %v1709
    %v1714 = vadd.f32 %v1670, %v1710
    %v1715 = vadd.f32 %v1671, %v1711
    %v1716 = vadd.f32 %v1672, %v1712
    %1717 = vrot.lane.b32.xlu0 %v1539, 1
    %v1718 = vpop.permute.xlu0 %1717
    %1719 = vrot.lane.b32.xlu0 %v1571, 1
    %v1720 = vpop.permute.xlu0 %1719
    %1721 = vrot.lane.b32.xlu0 %v1546, 1
    %v1722 = vpop.permute.xlu0 %1721
    %1723 = vrot.lane.b32.xlu0 %v1578, 1
    %v1724 = vpop.permute.xlu0 %1723
    %vm1725 = vcmp.lt.s32.totalorder %v439, 1
    %v1726 = vsel %vm1725, %v1718, %v1722
    %v1727 = vsel %vm1725, %v1720, %v1724
    %v1728 = vsel %vm1725, %v1722, %v1718
    %v1729 = vsel %vm1725, %v1724, %v1720
    %s1730 = sld [smem:[#allocation13 + $0x3]]
    %s1731 = sld [smem:[#allocation13 + $0xc]]
    %v1732 = vstv %s1730
    %v1733 = vstv %s1731
    %v1734 = vsel %vm1584, %v1732, %v1733
    %v1735 = vsel %vm1585, %v1732, %v1733
    %s1736 = scalar_lea.vmem [#allocation14], 3
    %v1737 = vld [vmem:[%s1736] ss:$8 sm:$0x3]
    %v1738 = vmul.f32 %v1734, %v1728
    %v1739 = vmul.f32 %v1734, %v1726
    %v1740 = vmul.f32 %v1735, %v1729
    %v1741 = vmul.f32 %v1735, %v1727
    %v1743 = vlaneseq
    %v1744 = vshrl.u32 %v1743, 7
    %v1745 = vsub.s32 0, %v1744
    %v1746 = vrot.slane %v1737, %v1745
    %v1747 = vlaneseq
    %v1748 = vshrl.u32 %v1747, 7
    %v1749 = vsub.s32 1, %v1748
    %v1750 = vrot.slane %v1737, %v1749
    %v1753 = vmul.f32 %v1746, %v1738
    %v1754 = vmul.f32 %v1750, %v1739
    %v1755 = vmul.f32 %v1746, %v1740
    %v1756 = vmul.f32 %v1750, %v1741
    %v1757 = vadd.f32 %v1713, %v1753
    %v1758 = vadd.f32 %v1714, %v1754
    %v1759 = vadd.f32 %v1715, %v1755
    %v1760 = vadd.f32 %v1716, %v1756
    %s1761 = sld [smem:[#allocation13 + $0x4]]
    %s1762 = sld [smem:[#allocation13 + $0xd]]
    %v1763 = vstv %s1761
    %v1764 = vstv %s1762
    %v1765 = vsel %vm1584, %v1763, %v1764
    %v1766 = vsel %vm1585, %v1763, %v1764
    %s1767 = scalar_lea.vmem [#allocation14], 4
    %v1768 = vld [vmem:[%s1767] ss:$8 sm:$0x3]
    %v1769 = vmul.f32 %v1765, %v1539
    %v1770 = vmul.f32 %v1765, %v1546
    %v1771 = vmul.f32 %v1766, %v1571
    %v1772 = vmul.f32 %v1766, %v1578
    %v1774 = vlaneseq
    %v1775 = vshrl.u32 %v1774, 7
    %v1776 = vsub.s32 0, %v1775
    %v1777 = vrot.slane %v1768, %v1776
    %v1778 = vlaneseq
    %v1779 = vshrl.u32 %v1778, 7
    %v1780 = vsub.s32 1, %v1779
    %v1781 = vrot.slane %v1768, %v1780
    %v1784 = vmul.f32 %v1777, %v1769
    %v1785 = vmul.f32 %v1781, %v1770
    %v1786 = vmul.f32 %v1777, %v1771
    %v1787 = vmul.f32 %v1781, %v1772
    %v1788 = vadd.f32 %v1757, %v1784
    %v1789 = vadd.f32 %v1758, %v1785
    %v1790 = vadd.f32 %v1759, %v1786
    %v1791 = vadd.f32 %v1760, %v1787
    %1792 = vrot.lane.b32.xlu0 %v1539, 127
    %v1793 = vpop.permute.xlu0 %1792
    %1794 = vrot.lane.b32.xlu0 %v1571, 127
    %v1795 = vpop.permute.xlu0 %1794
    %1796 = vrot.lane.b32.xlu0 %v1546, 127
    %v1797 = vpop.permute.xlu0 %1796
    %1798 = vrot.lane.b32.xlu0 %v1578, 127
    %v1799 = vpop.permute.xlu0 %1798
    %vm1800 = vcmp.lt.s32.totalorder %v439, 127
    %v1801 = vsel %vm1800, %v1793, %v1797
    %v1802 = vsel %vm1800, %v1795, %v1799
    %v1803 = vsel %vm1800, %v1797, %v1793
    %v1804 = vsel %vm1800, %v1799, %v1795
    %s1805 = sld [smem:[#allocation13 + $0x5]]
    %s1806 = sld [smem:[#allocation13 + $0xe]]
    %v1807 = vstv %s1805
    %v1808 = vstv %s1806
    %v1809 = vsel %vm1584, %v1807, %v1808
    %v1810 = vsel %vm1585, %v1807, %v1808
    %s1811 = scalar_lea.vmem [#allocation14], 5
    %v1812 = vld [vmem:[%s1811] ss:$8 sm:$0x3]
    %v1813 = vmul.f32 %v1809, %v1801
    %v1814 = vmul.f32 %v1809, %v1803
    %v1815 = vmul.f32 %v1810, %v1802
    %v1816 = vmul.f32 %v1810, %v1804
    %v1818 = vlaneseq
    %v1819 = vshrl.u32 %v1818, 7
    %v1820 = vsub.s32 0, %v1819
    %v1821 = vrot.slane %v1812, %v1820
    %v1822 = vlaneseq
    %v1823 = vshrl.u32 %v1822, 7
    %v1824 = vsub.s32 1, %v1823
    %v1825 = vrot.slane %v1812, %v1824
    %v1828 = vmul.f32 %v1821, %v1813
    %v1829 = vmul.f32 %v1825, %v1814
    %v1830 = vmul.f32 %v1821, %v1815
    %v1831 = vmul.f32 %v1825, %v1816
    %v1832 = vadd.f32 %v1788, %v1828
    %v1833 = vadd.f32 %v1789, %v1829
    %v1834 = vadd.f32 %v1790, %v1830
    %v1835 = vadd.f32 %v1791, %v1831
    %1836 = vrot.lane.b32.xlu0 %v1539, 113
    %v1837 = vpop.permute.xlu0 %1836
    %1838 = vrot.lane.b32.xlu0 %v1571, 113
    %v1839 = vpop.permute.xlu0 %1838
    %1840 = vrot.lane.b32.xlu0 %v1546, 113
    %v1841 = vpop.permute.xlu0 %1840
    %1842 = vrot.lane.b32.xlu0 %v1578, 113
    %v1843 = vpop.permute.xlu0 %1842
    %vm1844 = vcmp.lt.s32.totalorder %v439, 113
    %v1845 = vsel %vm1844, %v1837, %v1841
    %v1846 = vsel %vm1844, %v1839, %v1843
    %v1847 = vsel %vm1844, %v1841, %v1837
    %v1848 = vsel %vm1844, %v1843, %v1839
    %s1849 = sld [smem:[#allocation13 + $0x6]]
    %s1850 = sld [smem:[#allocation13 + $0xf]]
    %v1851 = vstv %s1849
    %v1852 = vstv %s1850
    %v1853 = vsel %vm1584, %v1851, %v1852
    %v1854 = vsel %vm1585, %v1851, %v1852
    %s1855 = scalar_lea.vmem [#allocation14], 6
    %v1856 = vld [vmem:[%s1855] ss:$8 sm:$0x3]
    %v1857 = vmul.f32 %v1853, %v1845
    %v1858 = vmul.f32 %v1853, %v1847
    %v1859 = vmul.f32 %v1854, %v1846
    %v1860 = vmul.f32 %v1854, %v1848
    %v1862 = vlaneseq
    %v1863 = vshrl.u32 %v1862, 7
    %v1864 = vsub.s32 0, %v1863
    %v1865 = vrot.slane %v1856, %v1864
    %v1866 = vlaneseq
    %v1867 = vshrl.u32 %v1866, 7
    %v1868 = vsub.s32 1, %v1867
    %v1869 = vrot.slane %v1856, %v1868
    %v1872 = vmul.f32 %v1865, %v1857
    %v1873 = vmul.f32 %v1869, %v1858
    %v1874 = vmul.f32 %v1865, %v1859
    %v1875 = vmul.f32 %v1869, %v1860
    %v1876 = vadd.f32 %v1832, %v1872
    %v1877 = vadd.f32 %v1833, %v1873
    %v1878 = vadd.f32 %v1834, %v1874
    %v1879 = vadd.f32 %v1835, %v1875
    %1880 = vrot.lane.b32.xlu0 %v1539, 112
    %v1881 = vpop.permute.xlu0 %1880
    %1882 = vrot.lane.b32.xlu0 %v1571, 112
    %v1883 = vpop.permute.xlu0 %1882
    %1884 = vrot.lane.b32.xlu0 %v1546, 112
    %v1885 = vpop.permute.xlu0 %1884
    %1886 = vrot.lane.b32.xlu0 %v1578, 112
    %v1887 = vpop.permute.xlu0 %1886
    %vm1888 = vcmp.lt.s32.totalorder %v439, 112
    %v1889 = vsel %vm1888, %v1881, %v1885
    %v1890 = vsel %vm1888, %v1883, %v1887
    %v1891 = vsel %vm1888, %v1885, %v1881
    %v1892 = vsel %vm1888, %v1887, %v1883
    %s1893 = sld [smem:[#allocation13 + $0x7]]
    %s1894 = sld [smem:[#allocation13 + $0x10]]
    %v1895 = vstv %s1893
    %v1896 = vstv %s1894
    %v1897 = vsel %vm1584, %v1895, %v1896
    %v1898 = vsel %vm1585, %v1895, %v1896
    %s1899 = scalar_lea.vmem [#allocation14], 7
    %v1900 = vld [vmem:[%s1899] ss:$8 sm:$0x3]
    %v1901 = vmul.f32 %v1897, %v1889
    %v1902 = vmul.f32 %v1897, %v1891
    %v1903 = vmul.f32 %v1898, %v1890
    %v1904 = vmul.f32 %v1898, %v1892
    %v1906 = vlaneseq
    %v1907 = vshrl.u32 %v1906, 7
    %v1908 = vsub.s32 0, %v1907
    %v1909 = vrot.slane %v1900, %v1908
    %v1910 = vlaneseq
    %v1911 = vshrl.u32 %v1910, 7
    %v1912 = vsub.s32 1, %v1911
    %v1913 = vrot.slane %v1900, %v1912
    %v1916 = vmul.f32 %v1909, %v1901
    %v1917 = vmul.f32 %v1913, %v1902
    %v1918 = vmul.f32 %v1909, %v1903
    %v1919 = vmul.f32 %v1913, %v1904
    %v1920 = vadd.f32 %v1876, %v1916
    %v1921 = vadd.f32 %v1877, %v1917
    %v1922 = vadd.f32 %v1878, %v1918
    %v1923 = vadd.f32 %v1879, %v1919
    %1924 = vrot.lane.b32.xlu0 %v1539, 111
    %v1925 = vpop.permute.xlu0 %1924
    %1926 = vrot.lane.b32.xlu0 %v1571, 111
    %v1927 = vpop.permute.xlu0 %1926
    %1928 = vrot.lane.b32.xlu0 %v1546, 111
    %v1929 = vpop.permute.xlu0 %1928
    %1930 = vrot.lane.b32.xlu0 %v1578, 111
    %v1931 = vpop.permute.xlu0 %1930
    %vm1932 = vcmp.lt.s32.totalorder %v439, 111
    %v1933 = vsel %vm1932, %v1925, %v1929
    %v1934 = vsel %vm1932, %v1927, %v1931
    %v1935 = vsel %vm1932, %v1929, %v1925
    %v1936 = vsel %vm1932, %v1931, %v1927
    %s1937 = sld [smem:[#allocation13 + $0x8]]
    %s1938 = sld [smem:[#allocation13 + $0x11]]
    %v1939 = vstv %s1937
    %v1940 = vstv %s1938
    %v1941 = vsel %vm1584, %v1939, %v1940
    %v1942 = vsel %vm1585, %v1939, %v1940
    %s1943 = scalar_lea.vmem [#allocation14], 16
    %v1944 = vld [vmem:[%s1943] ss:$8 sm:$0x3]
    %v1945 = vmul.f32 %v1941, %v1933
    %v1946 = vmul.f32 %v1941, %v1935
    %v1947 = vmul.f32 %v1942, %v1934
    %v1948 = vmul.f32 %v1942, %v1936
    %v1950 = vlaneseq
    %v1951 = vshrl.u32 %v1950, 7
    %v1952 = vsub.s32 0, %v1951
    %v1953 = vrot.slane %v1944, %v1952
    %v1954 = vlaneseq
    %v1955 = vshrl.u32 %v1954, 7
    %v1956 = vsub.s32 1, %v1955
    %v1957 = vrot.slane %v1944, %v1956
    %v1960 = vmul.f32 %v1953, %v1945
    %v1961 = vmul.f32 %v1957, %v1946
    %v1962 = vmul.f32 %v1953, %v1947
    %v1963 = vmul.f32 %v1957, %v1948
    %v1964 = vadd.f32 %v1920, %v1960
    %v1965 = vadd.f32 %v1921, %v1961
    %v1966 = vadd.f32 %v1922, %v1962
    %v1967 = vadd.f32 %v1923, %v1963
    %v1968 = vadd.f32 %v1964, %v1966
    %v1969 = vadd.f32 %v1965, %v1967
    %s1970 = sld [smem:[#allocation2]]
    %v1971 = vstv %s1970
    %v1972 = vadd.f32 %v1968, %v1971
    %v1973 = vadd.f32 %v1969, %v1971
    %v1974 = vxor.u32 %v1972, 2147483648
    %v1975 = vxor.u32 %v1973, 2147483648
    %v1976 = vmul.f32 %v1974, 1.442695
    %v1977 = vpow.pop %v1976
    %v1978 = vmul.f32 %v1975, 1.442695
    %v1979 = vpow.pop %v1978
    %v1980 = vadd.f32 %v1977, 1.0
    %v1981 = vadd.f32 %v1979, 1.0
    %v1982 = vrcp.pop %v1980
    %v1983 = vmul.f32 1.0, %v1982
    %v1984 = vrcp.pop %v1981
    %v1985 = vmul.f32 1.0, %v1984
    %v1988 = vcombine.low %v1983, %v1985
    %v1989 = vcombine.high %v1983, %v1985
    %v1991 = vunpack.c.l.s4 1966171168
    %v1992 = vunpack.c.0.s8 %v1991
    %v1993 = vlaneseq
    %v1994 = vshrl.u32 %v1993, 7
    %v1995 = vsub.s32 %v1992, %v1994
    %v1996 = vrot.slane %v1988, %v1995
    %v1998 = vunpack.c.l.s4 1966171168
    %v1999 = vunpack.c.0.s8 %v1998
    %v2000 = vlaneseq
    %v2001 = vshrl.u32 %v2000, 7
    %v2002 = vsub.s32 %v1999, %v2001
    %v2003 = vrot.slane %v1989, %v2002
    %v2004 = vcombine.high %v1996, %v1996
    %v2005 = vcombine.high %v2003, %v2003
    %v2007 = vunpack.c.l.s4 1966171168
    %v2008 = vunpack.c.0.s8 %v2007
    %v2009 = vlaneseq
    %v2010 = vshrl.u32 %v2009, 7
    %v2011 = vsub.s32 %v2008, %v2010
    %v2012 = vrot.slane %v1996, %v2011
    %v2014 = vunpack.c.l.s4 1966171168
    %v2015 = vunpack.c.0.s8 %v2014
    %v2016 = vlaneseq
    %v2017 = vshrl.u32 %v2016, 7
    %v2018 = vsub.s32 %v2015, %v2017
    %v2019 = vrot.slane %v2003, %v2018
    %v2021 = vunpack.c.l.s4 1966171168
    %v2022 = vunpack.c.0.s8 %v2021
    %v2023 = vlaneseq
    %v2024 = vshrl.u32 %v2023, 7
    %v2025 = vsub.s32 %v2022, %v2024
    %v2026 = vrot.slane %v2004, %v2025
    %v2028 = vunpack.c.l.s4 1966171168
    %v2029 = vunpack.c.0.s8 %v2028
    %v2030 = vlaneseq
    %v2031 = vshrl.u32 %v2030, 7
    %v2032 = vsub.s32 %v2029, %v2031
    %v2033 = vrot.slane %v2005, %v2032
    %v2034 = vcombine.high %v2012, %v2012
    %v2035 = vcombine.high %v2019, %v2019
    %v2036 = vcombine.high %v2026, %v2026
    %v2037 = vcombine.high %v2033, %v2033
    %v2038 = vlaneseq
    %v2039 = vshrl.u32 %v2038, 7
    %v2040 = vsub.s32 0, %v2039
    %v2041 = vrot.slane %v2012, %v2040
    %v2042 = vlaneseq
    %v2043 = vshrl.u32 %v2042, 7
    %v2044 = vsub.s32 1, %v2043
    %v2045 = vrot.slane %v2012, %v2044
    %v2046 = vlaneseq
    %v2047 = vshrl.u32 %v2046, 7
    %v2048 = vsub.s32 0, %v2047
    %v2049 = vrot.slane %v2026, %v2048
    %v2050 = vlaneseq
    %v2051 = vshrl.u32 %v2050, 7
    %v2052 = vsub.s32 1, %v2051
    %v2053 = vrot.slane %v2026, %v2052
    %v2054 = vlaneseq
    %v2055 = vshrl.u32 %v2054, 7
    %v2056 = vsub.s32 0, %v2055
    %v2057 = vrot.slane %v2034, %v2056
    %v2058 = vlaneseq
    %v2059 = vshrl.u32 %v2058, 7
    %v2060 = vsub.s32 1, %v2059
    %v2061 = vrot.slane %v2034, %v2060
    %v2062 = vlaneseq
    %v2063 = vshrl.u32 %v2062, 7
    %v2064 = vsub.s32 0, %v2063
    %v2065 = vrot.slane %v2036, %v2064
    %v2066 = vlaneseq
    %v2067 = vshrl.u32 %v2066, 7
    %v2068 = vsub.s32 1, %v2067
    %v2069 = vrot.slane %v2036, %v2068
    %v2070 = vlaneseq
    %v2071 = vshrl.u32 %v2070, 7
    %v2072 = vsub.s32 0, %v2071
    %v2073 = vrot.slane %v2019, %v2072
    %v2074 = vlaneseq
    %v2075 = vshrl.u32 %v2074, 7
    %v2076 = vsub.s32 1, %v2075
    %v2077 = vrot.slane %v2019, %v2076
    %v2078 = vlaneseq
    %v2079 = vshrl.u32 %v2078, 7
    %v2080 = vsub.s32 0, %v2079
    %v2081 = vrot.slane %v2033, %v2080
    %v2082 = vlaneseq
    %v2083 = vshrl.u32 %v2082, 7
    %v2084 = vsub.s32 1, %v2083
    %v2085 = vrot.slane %v2033, %v2084
    %v2086 = vlaneseq
    %v2087 = vshrl.u32 %v2086, 7
    %v2088 = vsub.s32 0, %v2087
    %v2089 = vrot.slane %v2035, %v2088
    %v2090 = vlaneseq
    %v2091 = vshrl.u32 %v2090, 7
    %v2092 = vsub.s32 1, %v2091
    %v2093 = vrot.slane %v2035, %v2092
    %v2094 = vlaneseq
    %v2095 = vshrl.u32 %v2094, 7
    %v2096 = vsub.s32 0, %v2095
    %v2097 = vrot.slane %v2037, %v2096
    %v2098 = vlaneseq
    %v2099 = vshrl.u32 %v2098, 7
    %v2100 = vsub.s32 1, %v2099
    %v2101 = vrot.slane %v2037, %v2100
    %v2118 = vmul.f32 %v1149, %v2041
    %v2119 = vmul.f32 %v1150, %v2045
    %v2120 = vmul.f32 %v1151, %v2041
    %v2121 = vmul.f32 %v1152, %v2045
    %v2122 = vmul.f32 %v1153, %v2041
    %v2123 = vmul.f32 %v1154, %v2045
    %v2124 = vmul.f32 %v1155, %v2041
    %v2125 = vmul.f32 %v1156, %v2045
    %v2126 = vmul.f32 %v1157, %v2049
    %v2127 = vmul.f32 %v1158, %v2053
    %v2128 = vmul.f32 %v1159, %v2049
    %v2129 = vmul.f32 %v1160, %v2053
    %v2130 = vmul.f32 %v1161, %v2049
    %v2131 = vmul.f32 %v1162, %v2053
    %v2132 = vmul.f32 %v1163, %v2049
    %v2133 = vmul.f32 %v1164, %v2053
    %v2134 = vmul.f32 %v1165, %v2057
    %v2135 = vmul.f32 %v1166, %v2061
    %v2136 = vmul.f32 %v1167, %v2057
    %v2137 = vmul.f32 %v1168, %v2061
    %v2138 = vmul.f32 %v1169, %v2057
    %v2139 = vmul.f32 %v1170, %v2061
    %v2140 = vmul.f32 %v1171, %v2057
    %v2141 = vmul.f32 %v1172, %v2061
    %v2142 = vmul.f32 %v1173, %v2065
    %v2143 = vmul.f32 %v1174, %v2069
    %v2144 = vmul.f32 %v1175, %v2065
    %v2145 = vmul.f32 %v1176, %v2069
    %v2146 = vmul.f32 %v1177, %v2065
    %v2147 = vmul.f32 %v1178, %v2069
    %v2148 = vmul.f32 %v1179, %v2065
    %v2149 = vmul.f32 %v1180, %v2069
    %v2150 = vmul.f32 %v1181, %v2073
    %v2151 = vmul.f32 %v1182, %v2077
    %v2152 = vmul.f32 %v1183, %v2073
    %v2153 = vmul.f32 %v1184, %v2077
    %v2154 = vmul.f32 %v1185, %v2073
    %v2155 = vmul.f32 %v1186, %v2077
    %v2156 = vmul.f32 %v1187, %v2073
    %v2157 = vmul.f32 %v1188, %v2077
    %v2158 = vmul.f32 %v1189, %v2081
    %v2159 = vmul.f32 %v1190, %v2085
    %v2160 = vmul.f32 %v1191, %v2081
    %v2161 = vmul.f32 %v1192, %v2085
    %v2162 = vmul.f32 %v1193, %v2081
    %v2163 = vmul.f32 %v1194, %v2085
    %v2164 = vmul.f32 %v1195, %v2081
    %v2165 = vmul.f32 %v1196, %v2085
    %v2166 = vmul.f32 %v1197, %v2089
    %v2167 = vmul.f32 %v1198, %v2093
    %v2168 = vmul.f32 %v1199, %v2089
    %v2169 = vmul.f32 %v1200, %v2093
    %v2170 = vmul.f32 %v1201, %v2089
    %v2171 = vmul.f32 %v1202, %v2093
    %v2172 = vmul.f32 %v1203, %v2089
    %v2173 = vmul.f32 %v1204, %v2093
    %v2174 = vmul.f32 %v1205, %v2097
    %v2175 = vmul.f32 %v1206, %v2101
    %v2176 = vmul.f32 %v1207, %v2097
    %v2177 = vmul.f32 %v1208, %v2101
    %v2178 = vmul.f32 %v1209, %v2097
    %v2179 = vmul.f32 %v1210, %v2101
    %v2180 = vmul.f32 %v1211, %v2097
    %v2181 = vmul.f32 %v1212, %v2101
    %2182 = vst [vmem:[#allocation16] sm:$0xff] %v2118
    %2183 = vst [vmem:[#allocation16 + $0x8] sm:$0xff] %v2119
    %2184 = vst [vmem:[#allocation16 + $0x10] sm:$0xff] %v2120
    %2185 = vst [vmem:[#allocation16 + $0x18] sm:$0xff] %v2121
    %2186 = vst [vmem:[#allocation16 + $0x20] sm:$0xff] %v2122
    %2187 = vst [vmem:[#allocation16 + $0x28] sm:$0xff] %v2123
    %2188 = vst [vmem:[#allocation16 + $0x30] sm:$0xff] %v2124
    %2189 = vst [vmem:[#allocation16 + $0x38] sm:$0xff] %v2125
    %2190 = vst [vmem:[#allocation16 + $0x40] sm:$0xff] %v2126
    %2191 = vst [vmem:[#allocation16 + $0x48] sm:$0xff] %v2127
    %2192 = vst [vmem:[#allocation16 + $0x50] sm:$0xff] %v2128
    %2193 = vst [vmem:[#allocation16 + $0x58] sm:$0xff] %v2129
    %2194 = vst [vmem:[#allocation16 + $0x60] sm:$0xff] %v2130
    %2195 = vst [vmem:[#allocation16 + $0x68] sm:$0xff] %v2131
    %2196 = vst [vmem:[#allocation16 + $0x70] sm:$0xff] %v2132
    %2197 = vst [vmem:[#allocation16 + $0x78] sm:$0xff] %v2133
    %2198 = vst [vmem:[#allocation16 + $0x80] sm:$0xff] %v2134
    %2199 = vst [vmem:[#allocation16 + $0x88] sm:$0xff] %v2135
    %2200 = vst [vmem:[#allocation16 + $0x90] sm:$0xff] %v2136
    %2201 = vst [vmem:[#allocation16 + $0x98] sm:$0xff] %v2137
    %2202 = vst [vmem:[#allocation16 + $0xa0] sm:$0xff] %v2138
    %2203 = vst [vmem:[#allocation16 + $0xa8] sm:$0xff] %v2139
    %2204 = vst [vmem:[#allocation16 + $0xb0] sm:$0xff] %v2140
    %2205 = vst [vmem:[#allocation16 + $0xb8] sm:$0xff] %v2141
    %2206 = vst [vmem:[#allocation16 + $0xc0] sm:$0xff] %v2142
    %2207 = vst [vmem:[#allocation16 + $0xc8] sm:$0xff] %v2143
    %2208 = vst [vmem:[#allocation16 + $0xd0] sm:$0xff] %v2144
    %2209 = vst [vmem:[#allocation16 + $0xd8] sm:$0xff] %v2145
    %2210 = vst [vmem:[#allocation16 + $0xe0] sm:$0xff] %v2146
    %2211 = vst [vmem:[#allocation16 + $0xe8] sm:$0xff] %v2147
    %2212 = vst [vmem:[#allocation16 + $0xf0] sm:$0xff] %v2148
    %2213 = vst [vmem:[#allocation16 + $0xf8] sm:$0xff] %v2149
    %2214 = vst [vmem:[#allocation16 + $0x100] sm:$0xff] %v2150
    %2215 = vst [vmem:[#allocation16 + $0x108] sm:$0xff] %v2151
    %2216 = vst [vmem:[#allocation16 + $0x110] sm:$0xff] %v2152
    %2217 = vst [vmem:[#allocation16 + $0x118] sm:$0xff] %v2153
    %2218 = vst [vmem:[#allocation16 + $0x120] sm:$0xff] %v2154
    %2219 = vst [vmem:[#allocation16 + $0x128] sm:$0xff] %v2155
    %2220 = vst [vmem:[#allocation16 + $0x130] sm:$0xff] %v2156
    %2221 = vst [vmem:[#allocation16 + $0x138] sm:$0xff] %v2157
    %2222 = vst [vmem:[#allocation16 + $0x140] sm:$0xff] %v2158
    %2223 = vst [vmem:[#allocation16 + $0x148] sm:$0xff] %v2159
    %2224 = vst [vmem:[#allocation16 + $0x150] sm:$0xff] %v2160
    %2225 = vst [vmem:[#allocation16 + $0x158] sm:$0xff] %v2161
    %2226 = vst [vmem:[#allocation16 + $0x160] sm:$0xff] %v2162
    %2227 = vst [vmem:[#allocation16 + $0x168] sm:$0xff] %v2163
    %2228 = vst [vmem:[#allocation16 + $0x170] sm:$0xff] %v2164
    %2229 = vst [vmem:[#allocation16 + $0x178] sm:$0xff] %v2165
    %2230 = vst [vmem:[#allocation16 + $0x180] sm:$0xff] %v2166
    %2231 = vst [vmem:[#allocation16 + $0x188] sm:$0xff] %v2167
    %2232 = vst [vmem:[#allocation16 + $0x190] sm:$0xff] %v2168
    %2233 = vst [vmem:[#allocation16 + $0x198] sm:$0xff] %v2169
    %2234 = vst [vmem:[#allocation16 + $0x1a0] sm:$0xff] %v2170
    %2235 = vst [vmem:[#allocation16 + $0x1a8] sm:$0xff] %v2171
    %2236 = vst [vmem:[#allocation16 + $0x1b0] sm:$0xff] %v2172
    %2237 = vst [vmem:[#allocation16 + $0x1b8] sm:$0xff] %v2173
    %2238 = vst [vmem:[#allocation16 + $0x1c0] sm:$0xff] %v2174
    %2239 = vst [vmem:[#allocation16 + $0x1c8] sm:$0xff] %v2175
    %2240 = vst [vmem:[#allocation16 + $0x1d0] sm:$0xff] %v2176
    %2241 = vst [vmem:[#allocation16 + $0x1d8] sm:$0xff] %v2177
    %2242 = vst [vmem:[#allocation16 + $0x1e0] sm:$0xff] %v2178
    %2243 = vst [vmem:[#allocation16 + $0x1e8] sm:$0xff] %v2179
    %2244 = vst [vmem:[#allocation16 + $0x1f0] sm:$0xff] %v2180
    %2245 = vst [vmem:[#allocation16 + $0x1f8] sm:$0xff] %v2181
    // Predicated region
    $region62: #{tpu_custom_call.1} parent=1 // pred_check
      _
    $region63: #{tpu_custom_call.1} parent=1 // pred_check_branch
      %2247 = sbr.rel (0) target = $region65
    $region64: #{tpu_custom_call.1} parent=1 // pred_region
      %s2249 = ssub.s32 8192, 8192
      %2250 = vsyncadd [#allocation5], %s2249
      %s2251 = sshll.u32 [#allocation16], 4
      %s2252 = int_to_ptr.vmem [resolvable:$true] %s2251
      %2257 = dma.vmem_to_hbm [thread:$0]  %s2252, 8192, %s8, [#allocation5], 256, 256, 16
    $region65: #{tpu_custom_call.1} parent=1 // pred_fallthru
      _
    // Predicated region
    $region66: #{tpu_custom_call.1} parent=1 // pred_check
      _
    $region67: #{tpu_custom_call.1} parent=1 // pred_check_branch
      %2259 = sbr.rel (0) target = $region69
    $region68: #{tpu_custom_call.1} parent=1 // pred_region
      %2260 = dma.done [#allocation5], 8192
    $region69: #{tpu_custom_call.1} parent=1 // pred_fallthru
      _
    %2261 = vsyncpa [#allocation4], 1
    %2262 = vsyncpa [#allocation8], 1
    %2263 = vsyncpa [#allocation11], 1
    %2264 = vsyncpa [#allocation15], 1
    %2265 = vsyncpa [#allocation5], 1
    %2266 = vsyncpa [#allocation6], 1

</llo_original>
